<compile_context>
chip_gen: v7x
topology: tpu7x:2x2x1
jax: 0.10.0
libtpu: 0.0.40
codegen_flags: <defaults>
</compile_context>

<pallas_src>
import functools

import jax
import jax.numpy as jnp
from jax.experimental import pallas as pl
from jax.experimental.pallas import tpu as pltpu

_MIB = 1024 * 1024


def _mhsa_kernel(x_ref, wqkv_ref, wproj_ref, bproj_ref, o_ref, attn_ref, *,
                 num_heads, head_dim, seq_len, batch_block):
    # x_ref:    (rows, E)  bf16 activations, rows = batch_block * seq_len
    # wqkv_ref: (E, 3E)    bf16, pre-transposed, q columns pre-scaled by 1/sqrt(Dh)
    # wproj_ref:(E, E)     bf16, pre-transposed
    # bproj_ref:(1, E)     f32
    # o_ref:    (rows, E)  output (x.dtype)
    # attn_ref: (rows, E)  bf16 VMEM scratch holding the merged per-head outputs
    H, Dh, S, Bt = num_heads, head_dim, seq_len, batch_block
    E = H * Dh
    rows = Bt * S

    # ---- QKV projection: one (rows, E) @ (E, 3E) MXU matmul, f32 accumulate.
    # Cast to bf16 immediately so only ONE (rows, 3E) activation tensor stays
    # live through the head loop (halves the live bytes in the hottest region).
    qkv = jnp.dot(x_ref[...], wqkv_ref[...],
                  preferred_element_type=jnp.float32).astype(jnp.bfloat16)

    # ---- Per-head attention.  qkv column layout is (3, H, Dh), matching
    # torch reshape(B, S, 3, H, Dh).permute(2, 0, 3, 1, 4).  Each head runs a
    # batched (batch = Bt) score/apply einsum; results land directly in the
    # dense bf16 scratch (== permute(0, 2, 1, 3).reshape merge), no concats.
    for h in range(H):
        q = qkv[:, h * Dh:(h + 1) * Dh].reshape(Bt, S, Dh)
        k = qkv[:, E + h * Dh:E + (h + 1) * Dh].reshape(Bt, S, Dh)
        v = qkv[:, 2 * E + h * Dh:2 * E + (h + 1) * Dh].reshape(Bt, S, Dh)

        s = jnp.einsum("bqd,bkd->bqk", q, k,
                       preferred_element_type=jnp.float32)         # (Bt, S, S) f32
        # Numerically-stable softmax in f32; divide via EUP approx reciprocal.
        s = s - jnp.max(s, axis=-1, keepdims=True)
        p = jnp.exp(s)
        p = p * pl.reciprocal(jnp.sum(p, axis=-1, keepdims=True), approx=True)

        o = jnp.einsum("bqk,bkd->bqd", p.astype(jnp.bfloat16), v,
                       preferred_element_type=jnp.float32)         # (Bt, S, Dh) f32
        attn_ref[:, h * Dh:(h + 1) * Dh] = o.reshape(rows, Dh).astype(jnp.bfloat16)

    # ---- Output projection + bias (f32 accumulate/add, cast at the store).
    out = jnp.dot(attn_ref[...], wproj_ref[...],
                  preferred_element_type=jnp.float32) + bproj_ref[...]
    o_ref[...] = out.astype(o_ref.dtype)


def _vmem_capacity_bytes():
    try:
        return int(pltpu.get_tpu_info().vmem_capacity_bytes)
    except Exception:
        return 128 * _MIB  # v5e/v6e physical; v7x has 64 MiB


def _estimate_vmem_bytes(batch_block, seq_len, embed_dim, num_heads, out_bytes=4):
    """Rough per-grid-step VMEM working set (bytes), with a 1.5x fudge factor."""
    E, S, H = embed_dim, seq_len, num_heads
    Dh = E // H
    rows = batch_block * S
    weights = (E * 3 * E + E * E) * 2 + E * 4                # resident bf16 W + f32 bias
    io = 2 * rows * E * 2 + 2 * rows * E * out_bytes         # double-buffered x / out slabs
    qkv = rows * 3 * E * 2                                   # bf16 qkv
    scores = 2 * batch_block * S * S * 4                     # scores + probs (f32)
    heads = 3 * batch_block * S * Dh * 2 + batch_block * S * Dh * 4
    scratch = rows * E * 2                                   # merged-head bf16 scratch
    proj = rows * E * 4                                      # f32 projection temp
    return int(1.5 * (weights + io + qkv + scores + heads + scratch + proj))


def _pick_batch_block(B, S, E, H, budget_bytes):
    """Largest batch_block whose working set fits the budget, with rows = bb*S a
    multiple of 16 (bf16 sublane tile) or the full array, preferring >= 2 grid
    steps so the parallel batch axis can shard across v7x's two TensorCores."""
    full_rows = B * S
    divisors = [bb for bb in range(1, B + 1) if B % bb == 0]

    def aligned(bb):
        rows = bb * S
        return rows % 16 == 0 or rows == full_rows

    ok = [bb for bb in divisors
          if aligned(bb) and _estimate_vmem_bytes(bb, S, E, H) <= budget_bytes]
    preferred = [bb for bb in ok if B == 1 or bb <= B // 2]
    if preferred:
        return max(preferred)
    if ok:
        return max(ok)
    aligned_bbs = [bb for bb in divisors if aligned(bb)]
    return min(aligned_bbs) if aligned_bbs else B


def multi_head_self_attention(x, w_qkv, w_proj, b_proj, *, num_heads,
                              batch_block=None):
    """x: (B, S, E); w_qkv: (3E, E); w_proj: (E, E); b_proj: (E,) — PyTorch layouts."""
    B, S, E = x.shape
    assert E % num_heads == 0
    head_dim = E // num_heads
    scale = 1.0 / (head_dim ** 0.5)

    vmem_cap = _vmem_capacity_bytes()
    if batch_block is None:
        batch_block = _pick_batch_block(B, S, E, num_heads, (2 * vmem_cap) // 5)
    assert B % batch_block == 0
    rows = batch_block * S
    grid = (B // batch_block,)

    vmem_limit = int(min(
        max(2 * _estimate_vmem_bytes(batch_block, S, E, num_heads), 32 * _MIB),
        (vmem_cap * 9) // 10))

    # Activations: flatten batch/seq into dense row slabs and cast to bf16
    # (halves x DMA bytes; f32 accumulation happens inside the kernel).
    x2d = x.reshape(B * S, E).astype(jnp.bfloat16)

    # PyTorch Linear weights are (out, in): pre-transpose, fold the 1/sqrt(Dh)
    # scale into the q columns, and cast to bf16 for the MXU.
    w_qkv_t = jnp.asarray(w_qkv, jnp.float32).T                       # (E, 3E)
    w_qkv_t = w_qkv_t.at[:, :E].multiply(scale).astype(jnp.bfloat16)
    w_proj_t = jnp.asarray(w_proj, jnp.float32).T.astype(jnp.bfloat16)  # (E, E)
    b_proj_2d = jnp.asarray(b_proj, jnp.float32).reshape(1, E)

    kernel = functools.partial(_mhsa_kernel, num_heads=num_heads,
                               head_dim=head_dim, seq_len=S,
                               batch_block=batch_block)

    def call(single_buffer_weights):
        def resident_spec(shape):
            index_map = lambda i, _shape=shape: (0,) * len(_shape)
            if single_buffer_weights:
                # Grid-invariant operands: no need to double-buffer them.
                return pl.BlockSpec(shape, index_map,
                                    pipeline_mode=pl.Buffered(1))
            return pl.BlockSpec(shape, index_map)

        return pl.pallas_call(
            kernel,
            out_shape=jax.ShapeDtypeStruct((B * S, E), x.dtype),
            grid_spec=pltpu.PrefetchScalarGridSpec(
                num_scalar_prefetch=0,
                grid=grid,
                in_specs=[
                    pl.BlockSpec((rows, E), lambda i: (i, 0)),   # x rows
                    resident_spec((E, 3 * E)),                   # W_qkv^T (resident)
                    resident_spec((E, E)),                       # W_proj^T (resident)
                    resident_spec((1, E)),                       # bias
                ],
                out_specs=pl.BlockSpec((rows, E), lambda i: (i, 0)),
                scratch_shapes=[pltpu.VMEM((rows, E), jnp.bfloat16)],
            ),
            compiler_params=pltpu.CompilerParams(
                dimension_semantics=("parallel",),
                vmem_limit_bytes=vmem_limit,
            ),
        )(x2d, w_qkv_t, w_proj_t, b_proj_2d)

    try:
        out2d = call(single_buffer_weights=True)
    except Exception:
        # Fallback if this JAX version rejects pipeline_mode=pl.Buffered(1).
        out2d = call(single_buffer_weights=False)

    return out2d.reshape(B, S, E)


def _reference(x, w_qkv, w_proj, b_proj, num_heads):
    B, S, E = x.shape
    Dh = E // num_heads
    qkv = x @ w_qkv.T                                          # (B, S, 3E)
    qkv = qkv.reshape(B, S, 3, num_heads, Dh)
    q, k, v = jnp.transpose(qkv, (2, 0, 3, 1, 4))              # each (B, H, S, Dh)
    scores = jnp.einsum("bhqd,bhkd->bhqk", q, k) / (Dh ** 0.5)
    w = jax.nn.softmax(scores, axis=-1)
    out = jnp.einsum("bhqk,bhkd->bhqd", w, v)                  # (B, H, S, Dh)
    out = jnp.transpose(out, (0, 2, 1, 3)).reshape(B, S, E)
    return out @ w_proj.T + b_proj


if __name__ == "__main__":
    B, S, E, H = 2, 8, 32, 4

    key = jax.random.PRNGKey(0)
    kx, kqkv, kproj, kbias = jax.random.split(key, 4)

    x = jax.random.normal(kx, (B, S, E), dtype=jnp.float32)
    # Deterministic "parameter init" (nn.Linear-like uniform scale).
    w_qkv = jax.random.uniform(kqkv, (3 * E, E), dtype=jnp.float32,
                               minval=-1.0, maxval=1.0) / (E ** 0.5)
    w_proj = jax.random.uniform(kproj, (E, E), dtype=jnp.float32,
                                minval=-1.0, maxval=1.0) / (E ** 0.5)
    b_proj = jax.random.uniform(kbias, (E,), dtype=jnp.float32,
                                minval=-1.0, maxval=1.0) / (E ** 0.5)

    out = multi_head_self_attention(x, w_qkv, w_proj, b_proj, num_heads=H)
    out = jax.block_until_ready(out)

    ref = _reference(x, w_qkv, w_proj, b_proj, H)
    assert out.shape == (B, S, E)
    # bf16 MXU operands + approx reciprocal -> looser tolerance than pure f32.
    err = float(jnp.max(jnp.abs(out - ref)))
    assert jnp.allclose(out, ref, atol=5e-2, rtol=5e-2), err

    print("KERNEL_OK")
</pallas_src>

<mosaic_0001>
module attributes {stable_mosaic.version = 11 : i64} {
  func.func @_mhsa_kernel(%arg0: i32, %arg1: memref<16x32xbf16, #tpu.memory_space<vmem>>, %arg2: memref<32x96xbf16, #tpu.memory_space<vmem>>, %arg3: memref<32x32xbf16, #tpu.memory_space<vmem>>, %arg4: memref<1x32xf32, #tpu.memory_space<vmem>>, %arg5: memref<16x32xf32, #tpu.memory_space<vmem>>, %arg6: memref<16x32xbf16, #tpu.memory_space<vmem>>) attributes {dimension_semantics = [#tpu.dimension_semantics<parallel>], iteration_bounds = array<i64: 1>, scalar_prefetch = 0 : i64, scratch_operands = 1 : i64, tpu.core_type = #tpu.core_type<tc>, window_params = [{transform_indices = @transform_0, window_bounds = array<i64: 16, 32>}, {pipeline_mode = #tpu.pipeline_mode<synchronous>, transform_indices = @transform_1, window_bounds = array<i64: 32, 96>}, {pipeline_mode = #tpu.pipeline_mode<synchronous>, transform_indices = @transform_2, window_bounds = array<i64: 32, 32>}, {pipeline_mode = #tpu.pipeline_mode<synchronous>, transform_indices = @transform_3, window_bounds = array<i64: 1, 32>}, {transform_indices = @transform_4, window_bounds = array<i64: 16, 32>}]} {
    %c0 = arith.constant 0 : index
    %c0_0 = arith.constant 0 : index
    %0 = vector.load %arg1[%c0, %c0_0] : memref<16x32xbf16, #tpu.memory_space<vmem>>, vector<16x32xbf16>
    %c0_1 = arith.constant 0 : index
    %c0_2 = arith.constant 0 : index
    %1 = vector.load %arg2[%c0_1, %c0_2] : memref<32x96xbf16, #tpu.memory_space<vmem>>, vector<32x96xbf16>
    %cst = arith.constant dense<0.000000e+00> : vector<16x96xf32>
    %2 = tpu.matmul %0, %1, %cst {dimension_numbers = #tpu.dot_dimension_numbers<[1], [0], [0], [1], [0, 0, 1, 1], [], []>} : vector<16x32xbf16>, vector<32x96xbf16>, vector<16x96xf32> -> vector<16x96xf32>
    %3 = arith.truncf %2 : vector<16x96xf32> to vector<16x96xbf16>
    %4 = vector.extract_strided_slice %3 {offsets = [0, 0], sizes = [16, 8], strides = [1, 1]} : vector<16x96xbf16> to vector<16x8xbf16>
    %5 = vector.shape_cast %4 : vector<16x8xbf16> to vector<2x8x8xbf16>
    %6 = vector.extract_strided_slice %3 {offsets = [0, 32], sizes = [16, 8], strides = [1, 1]} : vector<16x96xbf16> to vector<16x8xbf16>
    %7 = vector.shape_cast %6 : vector<16x8xbf16> to vector<2x8x8xbf16>
    %8 = vector.extract_strided_slice %3 {offsets = [0, 64], sizes = [16, 8], strides = [1, 1]} : vector<16x96xbf16> to vector<16x8xbf16>
    %9 = vector.shape_cast %8 : vector<16x8xbf16> to vector<2x8x8xbf16>
    "tpu.trace_start"() <{level = 10 : i32, message = "bqd,bkd->bqk"}> : () -> ()
    %cst_3 = arith.constant dense<0.000000e+00> : vector<2x8x8xf32>
    %10 = tpu.matmul %5, %7, %cst_3 {dimension_numbers = #tpu.dot_dimension_numbers<[2], [2], [1], [1], [0, 0, 0, 1, 1, 1], [0], [0]>} : vector<2x8x8xbf16>, vector<2x8x8xbf16>, vector<2x8x8xf32> -> vector<2x8x8xf32>
    "tpu.trace_stop"() : () -> ()
    %cst_4 = arith.constant dense<0xFF800000> : vector<2x8xf32>
    %11 = vector.multi_reduction <maximumf>, %10, %cst_4 [2] : vector<2x8x8xf32> to vector<2x8xf32>
    %12 = vector.shape_cast %11 : vector<2x8xf32> to vector<2x8x1xf32>
    %13 = vector.broadcast %12 : vector<2x8x1xf32> to vector<2x8x8xf32>
    %14 = arith.subf %10, %13 : vector<2x8x8xf32>
    %15 = math.exp %14 : vector<2x8x8xf32>
    %cst_5 = arith.constant dense<0.000000e+00> : vector<2x8xf32>
    %16 = vector.multi_reduction <add>, %15, %cst_5 [2] : vector<2x8x8xf32> to vector<2x8xf32>
    %17 = vector.shape_cast %16 : vector<2x8xf32> to vector<2x8x1xf32>
    %18 = tpu.reciprocal %17 {approx = true} : vector<2x8x1xf32> -> vector<2x8x1xf32>
    %19 = vector.broadcast %18 : vector<2x8x1xf32> to vector<2x8x8xf32>
    %20 = arith.mulf %15, %19 : vector<2x8x8xf32>
    %21 = arith.truncf %20 : vector<2x8x8xf32> to vector<2x8x8xbf16>
    "tpu.trace_start"() <{level = 10 : i32, message = "bqk,bkd->bqd"}> : () -> ()
    %cst_6 = arith.constant dense<0.000000e+00> : vector<2x8x8xf32>
    %22 = tpu.matmul %21, %9, %cst_6 {dimension_numbers = #tpu.dot_dimension_numbers<[2], [1], [1], [2], [0, 0, 0, 1, 1, 2], [0], [0]>} : vector<2x8x8xbf16>, vector<2x8x8xbf16>, vector<2x8x8xf32> -> vector<2x8x8xf32>
    "tpu.trace_stop"() : () -> ()
    %23 = vector.shape_cast %22 : vector<2x8x8xf32> to vector<16x8xf32>
    %24 = arith.truncf %23 : vector<16x8xf32> to vector<16x8xbf16>
    %c0_7 = arith.constant 0 : index
    %c0_8 = arith.constant 0 : index
    %25 = vector.load %arg6[%c0_7, %c0_8] : memref<16x32xbf16, #tpu.memory_space<vmem>>, vector<16x8xbf16>
    tpu.vector_store %arg6[%c0_7, %c0_8], %24 {strides = array<i32>} : memref<16x32xbf16, #tpu.memory_space<vmem>>, vector<16x8xbf16>,
    %26 = vector.extract_strided_slice %3 {offsets = [0, 8], sizes = [16, 8], strides = [1, 1]} : vector<16x96xbf16> to vector<16x8xbf16>
    %27 = vector.shape_cast %26 : vector<16x8xbf16> to vector<2x8x8xbf16>
    %28 = vector.extract_strided_slice %3 {offsets = [0, 40], sizes = [16, 8], strides = [1, 1]} : vector<16x96xbf16> to vector<16x8xbf16>
    %29 = vector.shape_cast %28 : vector<16x8xbf16> to vector<2x8x8xbf16>
    %30 = vector.extract_strided_slice %3 {offsets = [0, 72], sizes = [16, 8], strides = [1, 1]} : vector<16x96xbf16> to vector<16x8xbf16>
    %31 = vector.shape_cast %30 : vector<16x8xbf16> to vector<2x8x8xbf16>
    "tpu.trace_start"() <{level = 10 : i32, message = "bqd,bkd->bqk"}> : () -> ()
    %cst_9 = arith.constant dense<0.000000e+00> : vector<2x8x8xf32>
    %32 = tpu.matmul %27, %29, %cst_9 {dimension_numbers = #tpu.dot_dimension_numbers<[2], [2], [1], [1], [0, 0, 0, 1, 1, 1], [0], [0]>} : vector<2x8x8xbf16>, vector<2x8x8xbf16>, vector<2x8x8xf32> -> vector<2x8x8xf32>
    "tpu.trace_stop"() : () -> ()
    %cst_10 = arith.constant dense<0xFF800000> : vector<2x8xf32>
    %33 = vector.multi_reduction <maximumf>, %32, %cst_10 [2] : vector<2x8x8xf32> to vector<2x8xf32>
    %34 = vector.shape_cast %33 : vector<2x8xf32> to vector<2x8x1xf32>
    %35 = vector.broadcast %34 : vector<2x8x1xf32> to vector<2x8x8xf32>
    %36 = arith.subf %32, %35 : vector<2x8x8xf32>
    %37 = math.exp %36 : vector<2x8x8xf32>
    %cst_11 = arith.constant dense<0.000000e+00> : vector<2x8xf32>
    %38 = vector.multi_reduction <add>, %37, %cst_11 [2] : vector<2x8x8xf32> to vector<2x8xf32>
    %39 = vector.shape_cast %38 : vector<2x8xf32> to vector<2x8x1xf32>
    %40 = tpu.reciprocal %39 {approx = true} : vector<2x8x1xf32> -> vector<2x8x1xf32>
    %41 = vector.broadcast %40 : vector<2x8x1xf32> to vector<2x8x8xf32>
    %42 = arith.mulf %37, %41 : vector<2x8x8xf32>
    %43 = arith.truncf %42 : vector<2x8x8xf32> to vector<2x8x8xbf16>
    "tpu.trace_start"() <{level = 10 : i32, message = "bqk,bkd->bqd"}> : () -> ()
    %cst_12 = arith.constant dense<0.000000e+00> : vector<2x8x8xf32>
    %44 = tpu.matmul %43, %31, %cst_12 {dimension_numbers = #tpu.dot_dimension_numbers<[2], [1], [1], [2], [0, 0, 0, 1, 1, 2], [0], [0]>} : vector<2x8x8xbf16>, vector<2x8x8xbf16>, vector<2x8x8xf32> -> vector<2x8x8xf32>
    "tpu.trace_stop"() : () -> ()
    %45 = vector.shape_cast %44 : vector<2x8x8xf32> to vector<16x8xf32>
    %46 = arith.truncf %45 : vector<16x8xf32> to vector<16x8xbf16>
    %c0_13 = arith.constant 0 : index
    %c8 = arith.constant 8 : index
    %47 = vector.load %arg6[%c0_13, %c8] : memref<16x32xbf16, #tpu.memory_space<vmem>>, vector<16x8xbf16>
    tpu.vector_store %arg6[%c0_13, %c8], %46 {strides = array<i32>} : memref<16x32xbf16, #tpu.memory_space<vmem>>, vector<16x8xbf16>,
    %48 = vector.extract_strided_slice %3 {offsets = [0, 16], sizes = [16, 8], strides = [1, 1]} : vector<16x96xbf16> to vector<16x8xbf16>
    %49 = vector.shape_cast %48 : vector<16x8xbf16> to vector<2x8x8xbf16>
    %50 = vector.extract_strided_slice %3 {offsets = [0, 48], sizes = [16, 8], strides = [1, 1]} : vector<16x96xbf16> to vector<16x8xbf16>
    %51 = vector.shape_cast %50 : vector<16x8xbf16> to vector<2x8x8xbf16>
    %52 = vector.extract_strided_slice %3 {offsets = [0, 80], sizes = [16, 8], strides = [1, 1]} : vector<16x96xbf16> to vector<16x8xbf16>
    %53 = vector.shape_cast %52 : vector<16x8xbf16> to vector<2x8x8xbf16>
    "tpu.trace_start"() <{level = 10 : i32, message = "bqd,bkd->bqk"}> : () -> ()
    %cst_14 = arith.constant dense<0.000000e+00> : vector<2x8x8xf32>
    %54 = tpu.matmul %49, %51, %cst_14 {dimension_numbers = #tpu.dot_dimension_numbers<[2], [2], [1], [1], [0, 0, 0, 1, 1, 1], [0], [0]>} : vector<2x8x8xbf16>, vector<2x8x8xbf16>, vector<2x8x8xf32> -> vector<2x8x8xf32>
    "tpu.trace_stop"() : () -> ()
    %cst_15 = arith.constant dense<0xFF800000> : vector<2x8xf32>
    %55 = vector.multi_reduction <maximumf>, %54, %cst_15 [2] : vector<2x8x8xf32> to vector<2x8xf32>
    %56 = vector.shape_cast %55 : vector<2x8xf32> to vector<2x8x1xf32>
    %57 = vector.broadcast %56 : vector<2x8x1xf32> to vector<2x8x8xf32>
    %58 = arith.subf %54, %57 : vector<2x8x8xf32>
    %59 = math.exp %58 : vector<2x8x8xf32>
    %cst_16 = arith.constant dense<0.000000e+00> : vector<2x8xf32>
    %60 = vector.multi_reduction <add>, %59, %cst_16 [2] : vector<2x8x8xf32> to vector<2x8xf32>
    %61 = vector.shape_cast %60 : vector<2x8xf32> to vector<2x8x1xf32>
    %62 = tpu.reciprocal %61 {approx = true} : vector<2x8x1xf32> -> vector<2x8x1xf32>
    %63 = vector.broadcast %62 : vector<2x8x1xf32> to vector<2x8x8xf32>
    %64 = arith.mulf %59, %63 : vector<2x8x8xf32>
    %65 = arith.truncf %64 : vector<2x8x8xf32> to vector<2x8x8xbf16>
    "tpu.trace_start"() <{level = 10 : i32, message = "bqk,bkd->bqd"}> : () -> ()
    %cst_17 = arith.constant dense<0.000000e+00> : vector<2x8x8xf32>
    %66 = tpu.matmul %65, %53, %cst_17 {dimension_numbers = #tpu.dot_dimension_numbers<[2], [1], [1], [2], [0, 0, 0, 1, 1, 2], [0], [0]>} : vector<2x8x8xbf16>, vector<2x8x8xbf16>, vector<2x8x8xf32> -> vector<2x8x8xf32>
    "tpu.trace_stop"() : () -> ()
    %67 = vector.shape_cast %66 : vector<2x8x8xf32> to vector<16x8xf32>
    %68 = arith.truncf %67 : vector<16x8xf32> to vector<16x8xbf16>
    %c0_18 = arith.constant 0 : index
    %c16 = arith.constant 16 : index
    %69 = vector.load %arg6[%c0_18, %c16] : memref<16x32xbf16, #tpu.memory_space<vmem>>, vector<16x8xbf16>
    tpu.vector_store %arg6[%c0_18, %c16], %68 {strides = array<i32>} : memref<16x32xbf16, #tpu.memory_space<vmem>>, vector<16x8xbf16>,
    %70 = vector.extract_strided_slice %3 {offsets = [0, 24], sizes = [16, 8], strides = [1, 1]} : vector<16x96xbf16> to vector<16x8xbf16>
    %71 = vector.shape_cast %70 : vector<16x8xbf16> to vector<2x8x8xbf16>
    %72 = vector.extract_strided_slice %3 {offsets = [0, 56], sizes = [16, 8], strides = [1, 1]} : vector<16x96xbf16> to vector<16x8xbf16>
    %73 = vector.shape_cast %72 : vector<16x8xbf16> to vector<2x8x8xbf16>
    %74 = vector.extract_strided_slice %3 {offsets = [0, 88], sizes = [16, 8], strides = [1, 1]} : vector<16x96xbf16> to vector<16x8xbf16>
    %75 = vector.shape_cast %74 : vector<16x8xbf16> to vector<2x8x8xbf16>
    "tpu.trace_start"() <{level = 10 : i32, message = "bqd,bkd->bqk"}> : () -> ()
    %cst_19 = arith.constant dense<0.000000e+00> : vector<2x8x8xf32>
    %76 = tpu.matmul %71, %73, %cst_19 {dimension_numbers = #tpu.dot_dimension_numbers<[2], [2], [1], [1], [0, 0, 0, 1, 1, 1], [0], [0]>} : vector<2x8x8xbf16>, vector<2x8x8xbf16>, vector<2x8x8xf32> -> vector<2x8x8xf32>
    "tpu.trace_stop"() : () -> ()
    %cst_20 = arith.constant dense<0xFF800000> : vector<2x8xf32>
    %77 = vector.multi_reduction <maximumf>, %76, %cst_20 [2] : vector<2x8x8xf32> to vector<2x8xf32>
    %78 = vector.shape_cast %77 : vector<2x8xf32> to vector<2x8x1xf32>
    %79 = vector.broadcast %78 : vector<2x8x1xf32> to vector<2x8x8xf32>
    %80 = arith.subf %76, %79 : vector<2x8x8xf32>
    %81 = math.exp %80 : vector<2x8x8xf32>
    %cst_21 = arith.constant dense<0.000000e+00> : vector<2x8xf32>
    %82 = vector.multi_reduction <add>, %81, %cst_21 [2] : vector<2x8x8xf32> to vector<2x8xf32>
    %83 = vector.shape_cast %82 : vector<2x8xf32> to vector<2x8x1xf32>
    %84 = tpu.reciprocal %83 {approx = true} : vector<2x8x1xf32> -> vector<2x8x1xf32>
    %85 = vector.broadcast %84 : vector<2x8x1xf32> to vector<2x8x8xf32>
    %86 = arith.mulf %81, %85 : vector<2x8x8xf32>
    %87 = arith.truncf %86 : vector<2x8x8xf32> to vector<2x8x8xbf16>
    "tpu.trace_start"() <{level = 10 : i32, message = "bqk,bkd->bqd"}> : () -> ()
    %cst_22 = arith.constant dense<0.000000e+00> : vector<2x8x8xf32>
    %88 = tpu.matmul %87, %75, %cst_22 {dimension_numbers = #tpu.dot_dimension_numbers<[2], [1], [1], [2], [0, 0, 0, 1, 1, 2], [0], [0]>} : vector<2x8x8xbf16>, vector<2x8x8xbf16>, vector<2x8x8xf32> -> vector<2x8x8xf32>
    "tpu.trace_stop"() : () -> ()
    %89 = vector.shape_cast %88 : vector<2x8x8xf32> to vector<16x8xf32>
    %90 = arith.truncf %89 : vector<16x8xf32> to vector<16x8xbf16>
    %c0_23 = arith.constant 0 : index
    %c24 = arith.constant 24 : index
    %91 = vector.load %arg6[%c0_23, %c24] : memref<16x32xbf16, #tpu.memory_space<vmem>>, vector<16x8xbf16>
    tpu.vector_store %arg6[%c0_23, %c24], %90 {strides = array<i32>} : memref<16x32xbf16, #tpu.memory_space<vmem>>, vector<16x8xbf16>,
    %c0_24 = arith.constant 0 : index
    %c0_25 = arith.constant 0 : index
    %92 = vector.load %arg6[%c0_24, %c0_25] : memref<16x32xbf16, #tpu.memory_space<vmem>>, vector<16x32xbf16>
    %c0_26 = arith.constant 0 : index
    %c0_27 = arith.constant 0 : index
    %93 = vector.load %arg3[%c0_26, %c0_27] : memref<32x32xbf16, #tpu.memory_space<vmem>>, vector<32x32xbf16>
    %cst_28 = arith.constant dense<0.000000e+00> : vector<16x32xf32>
    %94 = tpu.matmul %92, %93, %cst_28 {dimension_numbers = #tpu.dot_dimension_numbers<[1], [0], [0], [1], [0, 0, 1, 1], [], []>} : vector<16x32xbf16>, vector<32x32xbf16>, vector<16x32xf32> -> vector<16x32xf32>
    %c0_29 = arith.constant 0 : index
    %c0_30 = arith.constant 0 : index
    %95 = vector.load %arg4[%c0_29, %c0_30] : memref<1x32xf32, #tpu.memory_space<vmem>>, vector<1x32xf32>
    %96 = vector.broadcast %95 : vector<1x32xf32> to vector<16x32xf32>
    %97 = arith.addf %94, %96 : vector<16x32xf32>
    %c0_31 = arith.constant 0 : index
    %c0_32 = arith.constant 0 : index
    %98 = vector.load %arg5[%c0_31, %c0_32] : memref<16x32xf32, #tpu.memory_space<vmem>>, vector<16x32xf32>
    tpu.vector_store %arg5[%c0_31, %c0_32], %97 {strides = array<i32>} : memref<16x32xf32, #tpu.memory_space<vmem>>, vector<16x32xf32>,
    return
  }
  func.func @transform_0(%arg0: i32) -> (i32, i32) {
    %c0_i32 = arith.constant 0 : i32
    %c0_i32_0 = arith.constant 0 : i32
    return %arg0, %c0_i32 : i32, i32
  }
  func.func @transform_1(%arg0: i32) -> (i32, i32) {
    %c0_i32 = arith.constant 0 : i32
    %c0_i32_0 = arith.constant 0 : i32
    %c0_i32_1 = arith.constant 0 : i32
    return %c0_i32, %c0_i32_0 : i32, i32
  }
  func.func @transform_2(%arg0: i32) -> (i32, i32) {
    %c0_i32 = arith.constant 0 : i32
    %c0_i32_0 = arith.constant 0 : i32
    %c0_i32_1 = arith.constant 0 : i32
    return %c0_i32, %c0_i32_0 : i32, i32
  }
  func.func @transform_3(%arg0: i32) -> (i32, i32) {
    %c0_i32 = arith.constant 0 : i32
    %c0_i32_0 = arith.constant 0 : i32
    %c0_i32_1 = arith.constant 0 : i32
    return %c0_i32, %c0_i32_0 : i32, i32
  }
  func.func @transform_4(%arg0: i32) -> (i32, i32) {
    %c0_i32 = arith.constant 0 : i32
    %c0_i32_0 = arith.constant 0 : i32
    return %arg0, %c0_i32 : i32, i32
  }
}

module attributes {stable_mosaic.version = 11 : i64} {
  func.func @_mhsa_kernel(%arg0: i32, %arg1: memref<16x32xbf16, #tpu.memory_space<vmem>>, %arg2: memref<32x96xbf16, #tpu.memory_space<vmem>>, %arg3: memref<32x32xbf16, #tpu.memory_space<vmem>>, %arg4: memref<1x32xf32, #tpu.memory_space<vmem>>, %arg5: memref<16x32xf32, #tpu.memory_space<vmem>>, %arg6: memref<16x32xbf16, #tpu.memory_space<vmem>>) attributes {dimension_semantics = [#tpu.dimension_semantics<parallel>], iteration_bounds = array<i64: 1>, scalar_prefetch = 0 : i64, scratch_operands = 1 : i64, tpu.core_type = #tpu.core_type<tc>, window_params = [{transform_indices = @transform_0, window_bounds = array<i64: 16, 32>}, {pipeline_mode = #tpu.pipeline_mode<synchronous>, transform_indices = @transform_1, window_bounds = array<i64: 32, 96>}, {pipeline_mode = #tpu.pipeline_mode<synchronous>, transform_indices = @transform_2, window_bounds = array<i64: 32, 32>}, {pipeline_mode = #tpu.pipeline_mode<synchronous>, transform_indices = @transform_3, window_bounds = array<i64: 1, 32>}, {transform_indices = @transform_4, window_bounds = array<i64: 16, 32>}]} {
    %c0 = arith.constant 0 : index
    %c0_0 = arith.constant 0 : index
    %0 = vector.load %arg1[%c0, %c0_0] : memref<16x32xbf16, #tpu.memory_space<vmem>>, vector<16x32xbf16>
    %c0_1 = arith.constant 0 : index
    %c0_2 = arith.constant 0 : index
    %1 = vector.load %arg2[%c0_1, %c0_2] : memref<32x96xbf16, #tpu.memory_space<vmem>>, vector<32x96xbf16>
    %cst = arith.constant dense<0.000000e+00> : vector<16x96xf32>
    %2 = tpu.matmul %0, %1, %cst {dimension_numbers = #tpu.dot_dimension_numbers<[1], [0], [0], [1], [0, 0, 1, 1], [], []>} : vector<16x32xbf16>, vector<32x96xbf16>, vector<16x96xf32> -> vector<16x96xf32>
    %3 = arith.truncf %2 : vector<16x96xf32> to vector<16x96xbf16>
    %4 = vector.extract_strided_slice %3 {offsets = [0, 0], sizes = [16, 8], strides = [1, 1]} : vector<16x96xbf16> to vector<16x8xbf16>
    %5 = vector.shape_cast %4 : vector<16x8xbf16> to vector<2x8x8xbf16>
    %6 = vector.extract_strided_slice %3 {offsets = [0, 32], sizes = [16, 8], strides = [1, 1]} : vector<16x96xbf16> to vector<16x8xbf16>
    %7 = vector.shape_cast %6 : vector<16x8xbf16> to vector<2x8x8xbf16>
    %8 = vector.extract_strided_slice %3 {offsets = [0, 64], sizes = [16, 8], strides = [1, 1]} : vector<16x96xbf16> to vector<16x8xbf16>
    %9 = vector.shape_cast %8 : vector<16x8xbf16> to vector<2x8x8xbf16>
    "tpu.trace_start"() <{level = 10 : i32, message = "bqd,bkd->bqk"}> : () -> ()
    %cst_3 = arith.constant dense<0.000000e+00> : vector<2x8x8xf32>
    %10 = tpu.matmul %5, %7, %cst_3 {dimension_numbers = #tpu.dot_dimension_numbers<[2], [2], [1], [1], [0, 0, 0, 1, 1, 1], [0], [0]>} : vector<2x8x8xbf16>, vector<2x8x8xbf16>, vector<2x8x8xf32> -> vector<2x8x8xf32>
    "tpu.trace_stop"() : () -> ()
    %cst_4 = arith.constant dense<0xFF800000> : vector<2x8xf32>
    %11 = vector.multi_reduction <maximumf>, %10, %cst_4 [2] : vector<2x8x8xf32> to vector<2x8xf32>
    %12 = vector.shape_cast %11 : vector<2x8xf32> to vector<2x8x1xf32>
    %13 = vector.broadcast %12 : vector<2x8x1xf32> to vector<2x8x8xf32>
    %14 = arith.subf %10, %13 : vector<2x8x8xf32>
    %15 = math.exp %14 : vector<2x8x8xf32>
    %cst_5 = arith.constant dense<0.000000e+00> : vector<2x8xf32>
    %16 = vector.multi_reduction <add>, %15, %cst_5 [2] : vector<2x8x8xf32> to vector<2x8xf32>
    %17 = vector.shape_cast %16 : vector<2x8xf32> to vector<2x8x1xf32>
    %18 = tpu.reciprocal %17 {approx = true} : vector<2x8x1xf32> -> vector<2x8x1xf32>
    %19 = vector.broadcast %18 : vector<2x8x1xf32> to vector<2x8x8xf32>
    %20 = arith.mulf %15, %19 : vector<2x8x8xf32>
    %21 = arith.truncf %20 : vector<2x8x8xf32> to vector<2x8x8xbf16>
    "tpu.trace_start"() <{level = 10 : i32, message = "bqk,bkd->bqd"}> : () -> ()
    %cst_6 = arith.constant dense<0.000000e+00> : vector<2x8x8xf32>
    %22 = tpu.matmul %21, %9, %cst_6 {dimension_numbers = #tpu.dot_dimension_numbers<[2], [1], [1], [2], [0, 0, 0, 1, 1, 2], [0], [0]>} : vector<2x8x8xbf16>, vector<2x8x8xbf16>, vector<2x8x8xf32> -> vector<2x8x8xf32>
    "tpu.trace_stop"() : () -> ()
    %23 = vector.shape_cast %22 : vector<2x8x8xf32> to vector<16x8xf32>
    %24 = arith.truncf %23 : vector<16x8xf32> to vector<16x8xbf16>
    %c0_7 = arith.constant 0 : index
    %c0_8 = arith.constant 0 : index
    %25 = vector.load %arg6[%c0_7, %c0_8] : memref<16x32xbf16, #tpu.memory_space<vmem>>, vector<16x8xbf16>
    tpu.vector_store %arg6[%c0_7, %c0_8], %24 {strides = array<i32>} : memref<16x32xbf16, #tpu.memory_space<vmem>>, vector<16x8xbf16>,
    %26 = vector.extract_strided_slice %3 {offsets = [0, 8], sizes = [16, 8], strides = [1, 1]} : vector<16x96xbf16> to vector<16x8xbf16>
    %27 = vector.shape_cast %26 : vector<16x8xbf16> to vector<2x8x8xbf16>
    %28 = vector.extract_strided_slice %3 {offsets = [0, 40], sizes = [16, 8], strides = [1, 1]} : vector<16x96xbf16> to vector<16x8xbf16>
    %29 = vector.shape_cast %28 : vector<16x8xbf16> to vector<2x8x8xbf16>
    %30 = vector.extract_strided_slice %3 {offsets = [0, 72], sizes = [16, 8], strides = [1, 1]} : vector<16x96xbf16> to vector<16x8xbf16>
    %31 = vector.shape_cast %30 : vector<16x8xbf16> to vector<2x8x8xbf16>
    "tpu.trace_start"() <{level = 10 : i32, message = "bqd,bkd->bqk"}> : () -> ()
    %cst_9 = arith.constant dense<0.000000e+00> : vector<2x8x8xf32>
    %32 = tpu.matmul %27, %29, %cst_9 {dimension_numbers = #tpu.dot_dimension_numbers<[2], [2], [1], [1], [0, 0, 0, 1, 1, 1], [0], [0]>} : vector<2x8x8xbf16>, vector<2x8x8xbf16>, vector<2x8x8xf32> -> vector<2x8x8xf32>
    "tpu.trace_stop"() : () -> ()
    %cst_10 = arith.constant dense<0xFF800000> : vector<2x8xf32>
    %33 = vector.multi_reduction <maximumf>, %32, %cst_10 [2] : vector<2x8x8xf32> to vector<2x8xf32>
    %34 = vector.shape_cast %33 : vector<2x8xf32> to vector<2x8x1xf32>
    %35 = vector.broadcast %34 : vector<2x8x1xf32> to vector<2x8x8xf32>
    %36 = arith.subf %32, %35 : vector<2x8x8xf32>
    %37 = math.exp %36 : vector<2x8x8xf32>
    %cst_11 = arith.constant dense<0.000000e+00> : vector<2x8xf32>
    %38 = vector.multi_reduction <add>, %37, %cst_11 [2] : vector<2x8x8xf32> to vector<2x8xf32>
    %39 = vector.shape_cast %38 : vector<2x8xf32> to vector<2x8x1xf32>
    %40 = tpu.reciprocal %39 {approx = true} : vector<2x8x1xf32> -> vector<2x8x1xf32>
    %41 = vector.broadcast %40 : vector<2x8x1xf32> to vector<2x8x8xf32>
    %42 = arith.mulf %37, %41 : vector<2x8x8xf32>
    %43 = arith.truncf %42 : vector<2x8x8xf32> to vector<2x8x8xbf16>
    "tpu.trace_start"() <{level = 10 : i32, message = "bqk,bkd->bqd"}> : () -> ()
    %cst_12 = arith.constant dense<0.000000e+00> : vector<2x8x8xf32>
    %44 = tpu.matmul %43, %31, %cst_12 {dimension_numbers = #tpu.dot_dimension_numbers<[2], [1], [1], [2], [0, 0, 0, 1, 1, 2], [0], [0]>} : vector<2x8x8xbf16>, vector<2x8x8xbf16>, vector<2x8x8xf32> -> vector<2x8x8xf32>
    "tpu.trace_stop"() : () -> ()
    %45 = vector.shape_cast %44 : vector<2x8x8xf32> to vector<16x8xf32>
    %46 = arith.truncf %45 : vector<16x8xf32> to vector<16x8xbf16>
    %c0_13 = arith.constant 0 : index
    %c8 = arith.constant 8 : index
    %47 = vector.load %arg6[%c0_13, %c8] : memref<16x32xbf16, #tpu.memory_space<vmem>>, vector<16x8xbf16>
    tpu.vector_store %arg6[%c0_13, %c8], %46 {strides = array<i32>} : memref<16x32xbf16, #tpu.memory_space<vmem>>, vector<16x8xbf16>,
    %48 = vector.extract_strided_slice %3 {offsets = [0, 16], sizes = [16, 8], strides = [1, 1]} : vector<16x96xbf16> to vector<16x8xbf16>
    %49 = vector.shape_cast %48 : vector<16x8xbf16> to vector<2x8x8xbf16>
    %50 = vector.extract_strided_slice %3 {offsets = [0, 48], sizes = [16, 8], strides = [1, 1]} : vector<16x96xbf16> to vector<16x8xbf16>
    %51 = vector.shape_cast %50 : vector<16x8xbf16> to vector<2x8x8xbf16>
    %52 = vector.extract_strided_slice %3 {offsets = [0, 80], sizes = [16, 8], strides = [1, 1]} : vector<16x96xbf16> to vector<16x8xbf16>
    %53 = vector.shape_cast %52 : vector<16x8xbf16> to vector<2x8x8xbf16>
    "tpu.trace_start"() <{level = 10 : i32, message = "bqd,bkd->bqk"}> : () -> ()
    %cst_14 = arith.constant dense<0.000000e+00> : vector<2x8x8xf32>
    %54 = tpu.matmul %49, %51, %cst_14 {dimension_numbers = #tpu.dot_dimension_numbers<[2], [2], [1], [1], [0, 0, 0, 1, 1, 1], [0], [0]>} : vector<2x8x8xbf16>, vector<2x8x8xbf16>, vector<2x8x8xf32> -> vector<2x8x8xf32>
    "tpu.trace_stop"() : () -> ()
    %cst_15 = arith.constant dense<0xFF800000> : vector<2x8xf32>
    %55 = vector.multi_reduction <maximumf>, %54, %cst_15 [2] : vector<2x8x8xf32> to vector<2x8xf32>
    %56 = vector.shape_cast %55 : vector<2x8xf32> to vector<2x8x1xf32>
    %57 = vector.broadcast %56 : vector<2x8x1xf32> to vector<2x8x8xf32>
    %58 = arith.subf %54, %57 : vector<2x8x8xf32>
    %59 = math.exp %58 : vector<2x8x8xf32>
    %cst_16 = arith.constant dense<0.000000e+00> : vector<2x8xf32>
    %60 = vector.multi_reduction <add>, %59, %cst_16 [2] : vector<2x8x8xf32> to vector<2x8xf32>
    %61 = vector.shape_cast %60 : vector<2x8xf32> to vector<2x8x1xf32>
    %62 = tpu.reciprocal %61 {approx = true} : vector<2x8x1xf32> -> vector<2x8x1xf32>
    %63 = vector.broadcast %62 : vector<2x8x1xf32> to vector<2x8x8xf32>
    %64 = arith.mulf %59, %63 : vector<2x8x8xf32>
    %65 = arith.truncf %64 : vector<2x8x8xf32> to vector<2x8x8xbf16>
    "tpu.trace_start"() <{level = 10 : i32, message = "bqk,bkd->bqd"}> : () -> ()
    %cst_17 = arith.constant dense<0.000000e+00> : vector<2x8x8xf32>
    %66 = tpu.matmul %65, %53, %cst_17 {dimension_numbers = #tpu.dot_dimension_numbers<[2], [1], [1], [2], [0, 0, 0, 1, 1, 2], [0], [0]>} : vector<2x8x8xbf16>, vector<2x8x8xbf16>, vector<2x8x8xf32> -> vector<2x8x8xf32>
    "tpu.trace_stop"() : () -> ()
    %67 = vector.shape_cast %66 : vector<2x8x8xf32> to vector<16x8xf32>
    %68 = arith.truncf %67 : vector<16x8xf32> to vector<16x8xbf16>
    %c0_18 = arith.constant 0 : index
    %c16 = arith.constant 16 : index
    %69 = vector.load %arg6[%c0_18, %c16] : memref<16x32xbf16, #tpu.memory_space<vmem>>, vector<16x8xbf16>
    tpu.vector_store %arg6[%c0_18, %c16], %68 {strides = array<i32>} : memref<16x32xbf16, #tpu.memory_space<vmem>>, vector<16x8xbf16>,
    %70 = vector.extract_strided_slice %3 {offsets = [0, 24], sizes = [16, 8], strides = [1, 1]} : vector<16x96xbf16> to vector<16x8xbf16>
    %71 = vector.shape_cast %70 : vector<16x8xbf16> to vector<2x8x8xbf16>
    %72 = vector.extract_strided_slice %3 {offsets = [0, 56], sizes = [16, 8], strides = [1, 1]} : vector<16x96xbf16> to vector<16x8xbf16>
    %73 = vector.shape_cast %72 : vector<16x8xbf16> to vector<2x8x8xbf16>
    %74 = vector.extract_strided_slice %3 {offsets = [0, 88], sizes = [16, 8], strides = [1, 1]} : vector<16x96xbf16> to vector<16x8xbf16>
    %75 = vector.shape_cast %74 : vector<16x8xbf16> to vector<2x8x8xbf16>
    "tpu.trace_start"() <{level = 10 : i32, message = "bqd,bkd->bqk"}> : () -> ()
    %cst_19 = arith.constant dense<0.000000e+00> : vector<2x8x8xf32>
    %76 = tpu.matmul %71, %73, %cst_19 {dimension_numbers = #tpu.dot_dimension_numbers<[2], [2], [1], [1], [0, 0, 0, 1, 1, 1], [0], [0]>} : vector<2x8x8xbf16>, vector<2x8x8xbf16>, vector<2x8x8xf32> -> vector<2x8x8xf32>
    "tpu.trace_stop"() : () -> ()
    %cst_20 = arith.constant dense<0xFF800000> : vector<2x8xf32>
    %77 = vector.multi_reduction <maximumf>, %76, %cst_20 [2] : vector<2x8x8xf32> to vector<2x8xf32>
    %78 = vector.shape_cast %77 : vector<2x8xf32> to vector<2x8x1xf32>
    %79 = vector.broadcast %78 : vector<2x8x1xf32> to vector<2x8x8xf32>
    %80 = arith.subf %76, %79 : vector<2x8x8xf32>
    %81 = math.exp %80 : vector<2x8x8xf32>
    %cst_21 = arith.constant dense<0.000000e+00> : vector<2x8xf32>
    %82 = vector.multi_reduction <add>, %81, %cst_21 [2] : vector<2x8x8xf32> to vector<2x8xf32>
    %83 = vector.shape_cast %82 : vector<2x8xf32> to vector<2x8x1xf32>
    %84 = tpu.reciprocal %83 {approx = true} : vector<2x8x1xf32> -> vector<2x8x1xf32>
    %85 = vector.broadcast %84 : vector<2x8x1xf32> to vector<2x8x8xf32>
    %86 = arith.mulf %81, %85 : vector<2x8x8xf32>
    %87 = arith.truncf %86 : vector<2x8x8xf32> to vector<2x8x8xbf16>
    "tpu.trace_start"() <{level = 10 : i32, message = "bqk,bkd->bqd"}> : () -> ()
    %cst_22 = arith.constant dense<0.000000e+00> : vector<2x8x8xf32>
    %88 = tpu.matmul %87, %75, %cst_22 {dimension_numbers = #tpu.dot_dimension_numbers<[2], [1], [1], [2], [0, 0, 0, 1, 1, 2], [0], [0]>} : vector<2x8x8xbf16>, vector<2x8x8xbf16>, vector<2x8x8xf32> -> vector<2x8x8xf32>
    "tpu.trace_stop"() : () -> ()
    %89 = vector.shape_cast %88 : vector<2x8x8xf32> to vector<16x8xf32>
    %90 = arith.truncf %89 : vector<16x8xf32> to vector<16x8xbf16>
    %c0_23 = arith.constant 0 : index
    %c24 = arith.constant 24 : index
    %91 = vector.load %arg6[%c0_23, %c24] : memref<16x32xbf16, #tpu.memory_space<vmem>>, vector<16x8xbf16>
    tpu.vector_store %arg6[%c0_23, %c24], %90 {strides = array<i32>} : memref<16x32xbf16, #tpu.memory_space<vmem>>, vector<16x8xbf16>,
    %c0_24 = arith.constant 0 : index
    %c0_25 = arith.constant 0 : index
    %92 = vector.load %arg6[%c0_24, %c0_25] : memref<16x32xbf16, #tpu.memory_space<vmem>>, vector<16x32xbf16>
    %c0_26 = arith.constant 0 : index
    %c0_27 = arith.constant 0 : index
    %93 = vector.load %arg3[%c0_26, %c0_27] : memref<32x32xbf16, #tpu.memory_space<vmem>>, vector<32x32xbf16>
    %cst_28 = arith.constant dense<0.000000e+00> : vector<16x32xf32>
    %94 = tpu.matmul %92, %93, %cst_28 {dimension_numbers = #tpu.dot_dimension_numbers<[1], [0], [0], [1], [0, 0, 1, 1], [], []>} : vector<16x32xbf16>, vector<32x32xbf16>, vector<16x32xf32> -> vector<16x32xf32>
    %c0_29 = arith.constant 0 : index
    %c0_30 = arith.constant 0 : index
    %95 = vector.load %arg4[%c0_29, %c0_30] : memref<1x32xf32, #tpu.memory_space<vmem>>, vector<1x32xf32>
    %96 = vector.broadcast %95 : vector<1x32xf32> to vector<16x32xf32>
    %97 = arith.addf %94, %96 : vector<16x32xf32>
    %c0_31 = arith.constant 0 : index
    %c0_32 = arith.constant 0 : index
    %98 = vector.load %arg5[%c0_31, %c0_32] : memref<16x32xf32, #tpu.memory_space<vmem>>, vector<16x32xf32>
    tpu.vector_store %arg5[%c0_31, %c0_32], %97 {strides = array<i32>} : memref<16x32xf32, #tpu.memory_space<vmem>>, vector<16x32xf32>,
    return
  }
  func.func @transform_0(%arg0: i32) -> (i32, i32) {
    %c0_i32 = arith.constant 0 : i32
    %c0_i32_0 = arith.constant 0 : i32
    return %arg0, %c0_i32 : i32, i32
  }
  func.func @transform_1(%arg0: i32) -> (i32, i32) {
    %c0_i32 = arith.constant 0 : i32
    %c0_i32_0 = arith.constant 0 : i32
    %c0_i32_1 = arith.constant 0 : i32
    return %c0_i32, %c0_i32_0 : i32, i32
  }
  func.func @transform_2(%arg0: i32) -> (i32, i32) {
    %c0_i32 = arith.constant 0 : i32
    %c0_i32_0 = arith.constant 0 : i32
    %c0_i32_1 = arith.constant 0 : i32
    return %c0_i32, %c0_i32_0 : i32, i32
  }
  func.func @transform_3(%arg0: i32) -> (i32, i32) {
    %c0_i32 = arith.constant 0 : i32
    %c0_i32_0 = arith.constant 0 : i32
    %c0_i32_1 = arith.constant 0 : i32
    return %c0_i32, %c0_i32_0 : i32, i32
  }
  func.func @transform_4(%arg0: i32) -> (i32, i32) {
    %c0_i32 = arith.constant 0 : i32
    %c0_i32_0 = arith.constant 0 : i32
    return %arg0, %c0_i32 : i32, i32
  }
}

</mosaic_0001>

<llo_original>
// kernel: tpu_custom_call.1
$region0: #{tpu_custom_call.1}
  #allocation0 [shape = 'u32[]', space=smem, size = 0x4, offset = 0x4, fixed_abs, tag = 'smem constant byte address 0x4 - core index']
  #allocation1 [shape = 'u32[144,128]{1,0:T(1,128)}', space=vmem, size = 0x12000, scoped, tag = 'internal scratch']
  #allocation2 [shape = 'bf16[16,32]{1,0:T(16,128)(2,1)}', space=vmem, size = 0x1000, scoped, tag = 'scratch operand']
  %s0 = inlined_call_operand.hbm [shape: bf16[16,32], index: 0, kind: input, shape index: {}]
  %s1 = inlined_call_operand.hbm [shape: bf16[32,96], index: 1, kind: input, shape index: {}]
  %s2 = inlined_call_operand.hbm [shape: bf16[32,32], index: 2, kind: input, shape index: {}]
  %s3 = inlined_call_operand.vmem [shape: f32[1,32], index: 3, kind: input, shape index: {}]
  %s4 = inlined_call_operand.hbm [shape: f32[16,32], index: 4, kind: output, shape index: {}]
  %s5 = sld [smem:[#allocation0]]
  $region38: #{tpu_custom_call.1} parent=0
    _
  %s7 = ssub.s32 1, %s5
  %s8 = scalar_select 0, %s7, %s5
  $region1: #{tpu_custom_call.1} parent=0
    #allocation3 [shape = 'u8[4096]{0}', space=vmem, size = 0x1000, scoped, tag = 'input window, operand 0, single buffered']
    #allocation4 [shape = 's32[1]{0}', space=sflag, size = 0x4, scoped, tag = 'scoped memory for tpu_custom_call.1']
    #allocation5 [shape = 's32[1]{0}', space=sflag, size = 0x4, scoped, tag = 'scoped memory for tpu_custom_call.1']
    #allocation6 [shape = 'u8[8192]{0}', space=vmem, size = 0x2000, scoped, tag = 'input window, operand 1, single buffered']
    #allocation7 [shape = 's32[1]{0}', space=sflag, size = 0x4, scoped, tag = 'scoped memory for tpu_custom_call.1']
    #allocation8 [shape = 'u8[8192]{0}', space=vmem, size = 0x2000, scoped, tag = 'input window, operand 2, single buffered']
    #allocation9 [shape = 'u8[8192]{0}', space=vmem, size = 0x2000, scoped, tag = 'output window, operand 0, single buffered']
    %9 = vsyncpa [#allocation4], 0
    %10 = vsyncpa [#allocation7], 0
    %11 = vsyncpa [#allocation5], 0
    // Predicated region
    $region2: #{tpu_custom_call.1} parent=1 // pred_check
      _
    $region3: #{tpu_custom_call.1} parent=1 // pred_check_branch
      %13 = sbr.rel (0) target = $region5
    $region4: #{tpu_custom_call.1} parent=1 // pred_region
      %s15 = ssub.s32 128, 128
      %16 = vsyncadd [#allocation4], %s15
      %s17 = sshll.u32 [#allocation3], 4
      %s18 = int_to_ptr.vmem [resolvable:$true] %s17
      %23 = dma.hbm_to_vmem [thread:$0]  %s0, 128, %s18, [#allocation4], 64, 64, 4
    $region5: #{tpu_custom_call.1} parent=1 // pred_fallthru
      _
    // Predicated region
    $region6: #{tpu_custom_call.1} parent=1 // pred_check
      _
    $region7: #{tpu_custom_call.1} parent=1 // pred_check_branch
      %25 = sbr.rel (0) target = $region9
    $region8: #{tpu_custom_call.1} parent=1 // pred_region
      %s27 = ssub.s32 256, 256
      %28 = vsyncadd [#allocation7], %s27
      %s29 = sshll.u32 [#allocation6], 4
      %s30 = int_to_ptr.vmem [resolvable:$true] %s29
      %35 = dma.hbm_to_vmem [thread:$0]  %s1, 256, %s30, [#allocation7], 64, 64, 4
    $region9: #{tpu_custom_call.1} parent=1 // pred_fallthru
      _
    // Predicated region
    $region10: #{tpu_custom_call.1} parent=1 // pred_check
      _
    $region11: #{tpu_custom_call.1} parent=1 // pred_check_branch
      %37 = sbr.rel (0) target = $region13
    $region12: #{tpu_custom_call.1} parent=1 // pred_region
      %s39 = ssub.s32 256, 256
      %40 = vsyncadd [#allocation7], %s39
      %s41 = sshll.u32 [#allocation8], 4
      %s42 = int_to_ptr.vmem [resolvable:$true] %s41
      %47 = dma.hbm_to_vmem [thread:$0]  %s2, 256, %s42, [#allocation7], 64, 64, 4
    $region13: #{tpu_custom_call.1} parent=1 // pred_fallthru
      _
    // Predicated region
    $region14: #{tpu_custom_call.1} parent=1 // pred_check
      _
    $region15: #{tpu_custom_call.1} parent=1 // pred_check_branch
      %49 = sbr.rel (0) target = $region17
    $region16: #{tpu_custom_call.1} parent=1 // pred_region
      _
    $region17: #{tpu_custom_call.1} parent=1 // pred_fallthru
      _
    // Predicated region
    $region18: #{tpu_custom_call.1} parent=1 // pred_check
      _
    $region19: #{tpu_custom_call.1} parent=1 // pred_check_branch
      %51 = sbr.rel (0) target = $region21
    $region20: #{tpu_custom_call.1} parent=1 // pred_region
      %52 = dma.done [#allocation4], 128
    $region21: #{tpu_custom_call.1} parent=1 // pred_fallthru
      _
    // Predicated region
    $region22: #{tpu_custom_call.1} parent=1 // pred_check
      _
    $region23: #{tpu_custom_call.1} parent=1 // pred_check_branch
      %54 = sbr.rel (0) target = $region25
    $region24: #{tpu_custom_call.1} parent=1 // pred_region
      %55 = dma.done [#allocation7], 256
    $region25: #{tpu_custom_call.1} parent=1 // pred_fallthru
      _
    // Predicated region
    $region26: #{tpu_custom_call.1} parent=1 // pred_check
      _
    $region27: #{tpu_custom_call.1} parent=1 // pred_check_branch
      %57 = sbr.rel (0) target = $region29
    $region28: #{tpu_custom_call.1} parent=1 // pred_region
      %58 = dma.done [#allocation7], 256
    $region29: #{tpu_custom_call.1} parent=1 // pred_fallthru
      _
    %v60 = vld [vmem:[#allocation3] sm:$0xf]
    %v61 = vld [vmem:[#allocation3 + $0x4] sm:$0xf]
    %v62 = vld [vmem:[#allocation6] sm:$0xf]
    %v63 = vld [vmem:[#allocation6 + $0x4] sm:$0xf]
    %v64 = vld [vmem:[#allocation6 + $0x8] sm:$0xf]
    %v65 = vld [vmem:[#allocation6 + $0xc] sm:$0xf]
    %v68 = vunpack.c.l.b16 %v60
    %v69 = vunpack.c.l.b16 %v61
    %v70 = vpack.c.b16 %v69, %v68
    %v75 = vunpack.c.l.b16 %v62
    %v76 = vunpack.c.l.b16 %v63
    %v77 = vunpack.c.l.b16 %v64
    %v78 = vunpack.c.l.b16 %v65
    %v79 = vpack.c.b16 %v76, %v75
    %v80 = vpack.c.b16 %v78, %v77
    %vm83 = vcmask 261120
    %v85 = vsel %vm83, %v70, 0
    %87 = vmatprep.subr.bf16.mxu0 0
    %88 = vmatpush1.bf16.msra.mxu0 %v79
    %89 = vmatprep.subr.bf16.mxu0 0
    %90 = vmatpush1.bf16.msra.mxu0 %v80
    %91 = vmatprep.subr.bf16.mxu0 0
    %92 = vmatpush1.bf16.msra.mxu0 0
    %93 = vmatprep.subr.bf16.mxu0 0
    %94 = vmatpush1.bf16.msra.mxu0 0
    %95 = vmatprep.subr.bf16.mxu0 0
    %96 = vmatpush1.bf16.msra.mxu0 0
    %97 = vmatprep.subr.bf16.mxu0 0
    %98 = vmatpush1.bf16.msra.mxu0 0
    %99 = vmatprep.subr.bf16.mxu0 0
    %100 = vmatpush1.bf16.msra.mxu0 0
    %101 = vmatprep.subr.bf16.mxu0 0
    %102 = vmatpush1.bf16.msra.mxu0 0
    %103 = vmatprep.subr.bf16.mxu0 0
    %104 = vmatpush1.bf16.msra.mxu0 0
    %105 = vmatprep.subr.bf16.mxu0 0
    %106 = vmatpush1.bf16.msra.mxu0 0
    %107 = vmatprep.subr.bf16.mxu0 0
    %108 = vmatpush1.bf16.msra.mxu0 0
    %109 = vmatprep.subr.bf16.mxu0 0
    %110 = vmatpush1.bf16.msra.mxu0 0
    %111 = vmatprep.subr.bf16.mxu0 0
    %112 = vmatpush1.bf16.msra.mxu0 0
    %113 = vmatprep.subr.bf16.mxu0 0
    %114 = vmatpush1.bf16.msra.mxu0 0
    %115 = vmatprep.subr.bf16.mxu0 0
    %116 = vmatpush1.bf16.msra.mxu0 0
    %117 = vmatprep.subr.bf16.mxu0 0
    %118 = vmatpush1.bf16.msra.mxu0 0
    %119 = vmatprep.mubr.bf16.mxu0 0
    %120 = vmatmul.mubr.bf16.gmra.mrb[0].mxu0 %v85
    %v121 = vpop.f32.mrb[0].mxu0
    %v122 = vadd.f32 0.0, %v121
    %v123 = vpop.f32.mrb[0].mxu0
    %v124 = vpop.f32.mrb[0].mxu0
    %v125 = vadd.f32 0.0, %v124
    %v126 = vpop.f32.mrb[0].mxu0
    %127 = vdwg.mxu0
    %v128 = vpack.c.bf16 %v125, %v122
    %v130 = vunpack.c.l.b16 %v128
    %v131 = vunpack.c.h.b16 %v128
    %v132 = vpack.c.b16 %v130, %v130
    %v133 = vpack.c.b16 %v131, %v131
    %134 = vrot.lane.b32.xlu0 %v132, 96
    %v135 = vpop.permute.xlu0 %134
    %vm136 = vcmask 64512
    %v138 = vsel %vm136, %v132, 0
    %v141 = vsel %vm136, %v135, 0
    %143 = vmatprep.subr.bf16.mxu0 0
    %144 = vmatpush1.bf16.xpose.msra.mxu0 %v141
    %145 = vmatprep.subr.bf16.mxu0 0
    %146 = vmatpush1.bf16.xpose.msra.mxu0 0
    %147 = vmatprep.subr.bf16.mxu0 0
    %148 = vmatpush1.bf16.xpose.msra.mxu0 0
    %149 = vmatprep.subr.bf16.mxu0 0
    %150 = vmatpush1.bf16.xpose.msra.mxu0 0
    %151 = vmatprep.subr.bf16.mxu0 0
    %152 = vmatpush1.bf16.xpose.msra.mxu0 0
    %153 = vmatprep.subr.bf16.mxu0 0
    %154 = vmatpush1.bf16.xpose.msra.mxu0 0
    %155 = vmatprep.subr.bf16.mxu0 0
    %156 = vmatpush1.bf16.xpose.msra.mxu0 0
    %157 = vmatprep.subr.bf16.mxu0 0
    %158 = vmatpush1.bf16.xpose.msra.mxu0 0
    %159 = vmatprep.subr.bf16.mxu0 0
    %160 = vmatpush1.bf16.xpose.msra.mxu0 0
    %161 = vmatprep.subr.bf16.mxu0 0
    %162 = vmatpush1.bf16.xpose.msra.mxu0 0
    %163 = vmatprep.subr.bf16.mxu0 0
    %164 = vmatpush1.bf16.xpose.msra.mxu0 0
    %165 = vmatprep.subr.bf16.mxu0 0
    %166 = vmatpush1.bf16.xpose.msra.mxu0 0
    %167 = vmatprep.subr.bf16.mxu0 0
    %168 = vmatpush1.bf16.xpose.msra.mxu0 0
    %169 = vmatprep.subr.bf16.mxu0 0
    %170 = vmatpush1.bf16.xpose.msra.mxu0 0
    %171 = vmatprep.subr.bf16.mxu0 0
    %172 = vmatpush1.bf16.xpose.msra.mxu0 0
    %173 = vmatprep.subr.bf16.mxu0 0
    %174 = vmatpush1.bf16.xpose.msra.mxu0 0
    %175 = vmatprep.mubr.bf16.mxu0 0
    %176 = vmatmul.mubr.bf16.gmra.mrb[0].mxu0 %v138
    %v177 = vpop.f32.mrb[0].mxu0
    %v178 = vadd.f32 0.0, %v177
    %v179 = vpop.f32.mrb[0].mxu0
    %v180 = vpop.f32.mrb[0].mxu0
    %v181 = vpop.f32.mrb[0].mxu0
    %182 = vdwg.mxu0
    %183 = vrot.lane.b32.xlu0 %v133, 96
    %v184 = vpop.permute.xlu0 %183
    %v186 = vsel %vm136, %v133, 0
    %v189 = vsel %vm136, %v184, 0
    %191 = vmatprep.subr.bf16.mxu0 0
    %192 = vmatpush1.bf16.xpose.msra.mxu0 %v189
    %193 = vmatprep.subr.bf16.mxu0 0
    %194 = vmatpush1.bf16.xpose.msra.mxu0 0
    %195 = vmatprep.subr.bf16.mxu0 0
    %196 = vmatpush1.bf16.xpose.msra.mxu0 0
    %197 = vmatprep.subr.bf16.mxu0 0
    %198 = vmatpush1.bf16.xpose.msra.mxu0 0
    %199 = vmatprep.subr.bf16.mxu0 0
    %200 = vmatpush1.bf16.xpose.msra.mxu0 0
    %201 = vmatprep.subr.bf16.mxu0 0
    %202 = vmatpush1.bf16.xpose.msra.mxu0 0
    %203 = vmatprep.subr.bf16.mxu0 0
    %204 = vmatpush1.bf16.xpose.msra.mxu0 0
    %205 = vmatprep.subr.bf16.mxu0 0
    %206 = vmatpush1.bf16.xpose.msra.mxu0 0
    %207 = vmatprep.subr.bf16.mxu0 0
    %208 = vmatpush1.bf16.xpose.msra.mxu0 0
    %209 = vmatprep.subr.bf16.mxu0 0
    %210 = vmatpush1.bf16.xpose.msra.mxu0 0
    %211 = vmatprep.subr.bf16.mxu0 0
    %212 = vmatpush1.bf16.xpose.msra.mxu0 0
    %213 = vmatprep.subr.bf16.mxu0 0
    %214 = vmatpush1.bf16.xpose.msra.mxu0 0
    %215 = vmatprep.subr.bf16.mxu0 0
    %216 = vmatpush1.bf16.xpose.msra.mxu0 0
    %217 = vmatprep.subr.bf16.mxu0 0
    %218 = vmatpush1.bf16.xpose.msra.mxu0 0
    %219 = vmatprep.subr.bf16.mxu0 0
    %220 = vmatpush1.bf16.xpose.msra.mxu0 0
    %221 = vmatprep.subr.bf16.mxu0 0
    %222 = vmatpush1.bf16.xpose.msra.mxu0 0
    %223 = vmatprep.mubr.bf16.mxu0 0
    %224 = vmatmul.mubr.bf16.gmra.mrb[0].mxu0 %v186
    %v225 = vpop.f32.mrb[0].mxu0
    %v226 = vadd.f32 0.0, %v225
    %v227 = vpop.f32.mrb[0].mxu0
    %v228 = vpop.f32.mrb[0].mxu0
    %v229 = vpop.f32.mrb[0].mxu0
    %230 = vdwg.mxu0
    %v231 = vsel %vm136, %v178, -inf
    %232 = vmax.xlane.f32.xlu0 %v231
    %v233 = vpop.xlane.xlu0 %232
    %v234 = vsel %vm136, %v226, -inf
    %235 = vmax.xlane.f32.xlu0 %v234
    %v236 = vpop.xlane.xlu0 %235
    %v237 = vsub.f32 %v178, %v233
    %v238 = vsub.f32 %v226, %v236
    %v239 = vmul.f32 %v237, 1.442695
    %v240 = vpow.pop %v239
    %v241 = vmul.f32 %v238, 1.442695
    %v242 = vpow.pop %v241
    %v243 = vsel %vm136, %v240, 0.0
    %244 = vadd.xlane.f32.xlu0 %v243
    %v245 = vpop.xlane.xlu0 %244
    %v246 = vsel %vm136, %v242, 0.0
    %247 = vadd.xlane.f32.xlu0 %v246
    %v248 = vpop.xlane.xlu0 %247
    %v249 = vrcp.pop %v245
    %v250 = vrcp.pop %v248
    %v251 = vmul.f32 %v240, %v249
    %v252 = vmul.f32 %v242, %v250
    %v253 = vpack.c.bf16 %v251, %v251
    %v254 = vpack.c.bf16 %v252, %v252
    %255 = vrot.lane.b32.xlu0 %v132, 64
    %v256 = vpop.permute.xlu0 %255
    %v258 = vsel %vm136, %v253, 0
    %vm260 = vcmask 1043456
    %v262 = vsel %vm260, %v256, 0
    %264 = vmatprep.subr.bf16.mxu0 0
    %265 = vmatpush1.bf16.msra.mxu0 %v262
    %266 = vmatprep.subr.bf16.mxu0 0
    %267 = vmatpush1.bf16.msra.mxu0 0
    %268 = vmatprep.subr.bf16.mxu0 0
    %269 = vmatpush1.bf16.msra.mxu0 0
    %270 = vmatprep.subr.bf16.mxu0 0
    %271 = vmatpush1.bf16.msra.mxu0 0
    %272 = vmatprep.subr.bf16.mxu0 0
    %273 = vmatpush1.bf16.msra.mxu0 0
    %274 = vmatprep.subr.bf16.mxu0 0
    %275 = vmatpush1.bf16.msra.mxu0 0
    %276 = vmatprep.subr.bf16.mxu0 0
    %277 = vmatpush1.bf16.msra.mxu0 0
    %278 = vmatprep.subr.bf16.mxu0 0
    %279 = vmatpush1.bf16.msra.mxu0 0
    %280 = vmatprep.subr.bf16.mxu0 0
    %281 = vmatpush1.bf16.msra.mxu0 0
    %282 = vmatprep.subr.bf16.mxu0 0
    %283 = vmatpush1.bf16.msra.mxu0 0
    %284 = vmatprep.subr.bf16.mxu0 0
    %285 = vmatpush1.bf16.msra.mxu0 0
    %286 = vmatprep.subr.bf16.mxu0 0
    %287 = vmatpush1.bf16.msra.mxu0 0
    %288 = vmatprep.subr.bf16.mxu0 0
    %289 = vmatpush1.bf16.msra.mxu0 0
    %290 = vmatprep.subr.bf16.mxu0 0
    %291 = vmatpush1.bf16.msra.mxu0 0
    %292 = vmatprep.subr.bf16.mxu0 0
    %293 = vmatpush1.bf16.msra.mxu0 0
    %294 = vmatprep.subr.bf16.mxu0 0
    %295 = vmatpush1.bf16.msra.mxu0 0
    %296 = vmatprep.mubr.bf16.mxu0 0
    %297 = vmatmul.mubr.bf16.gmra.mrb[0].mxu0 %v258
    %v298 = vpop.f32.mrb[0].mxu0
    %v299 = vadd.f32 0.0, %v298
    %v300 = vpop.f32.mrb[0].mxu0
    %v301 = vpop.f32.mrb[0].mxu0
    %v302 = vpop.f32.mrb[0].mxu0
    %303 = vdwg.mxu0
    %304 = vrot.lane.b32.xlu0 %v133, 64
    %v305 = vpop.permute.xlu0 %304
    %v307 = vsel %vm136, %v254, 0
    %v310 = vsel %vm260, %v305, 0
    %312 = vmatprep.subr.bf16.mxu0 0
    %313 = vmatpush1.bf16.msra.mxu0 %v310
    %314 = vmatprep.subr.bf16.mxu0 0
    %315 = vmatpush1.bf16.msra.mxu0 0
    %316 = vmatprep.subr.bf16.mxu0 0
    %317 = vmatpush1.bf16.msra.mxu0 0
    %318 = vmatprep.subr.bf16.mxu0 0
    %319 = vmatpush1.bf16.msra.mxu0 0
    %320 = vmatprep.subr.bf16.mxu0 0
    %321 = vmatpush1.bf16.msra.mxu0 0
    %322 = vmatprep.subr.bf16.mxu0 0
    %323 = vmatpush1.bf16.msra.mxu0 0
    %324 = vmatprep.subr.bf16.mxu0 0
    %325 = vmatpush1.bf16.msra.mxu0 0
    %326 = vmatprep.subr.bf16.mxu0 0
    %327 = vmatpush1.bf16.msra.mxu0 0
    %328 = vmatprep.subr.bf16.mxu0 0
    %329 = vmatpush1.bf16.msra.mxu0 0
    %330 = vmatprep.subr.bf16.mxu0 0
    %331 = vmatpush1.bf16.msra.mxu0 0
    %332 = vmatprep.subr.bf16.mxu0 0
    %333 = vmatpush1.bf16.msra.mxu0 0
    %334 = vmatprep.subr.bf16.mxu0 0
    %335 = vmatpush1.bf16.msra.mxu0 0
    %336 = vmatprep.subr.bf16.mxu0 0
    %337 = vmatpush1.bf16.msra.mxu0 0
    %338 = vmatprep.subr.bf16.mxu0 0
    %339 = vmatpush1.bf16.msra.mxu0 0
    %340 = vmatprep.subr.bf16.mxu0 0
    %341 = vmatpush1.bf16.msra.mxu0 0
    %342 = vmatprep.subr.bf16.mxu0 0
    %343 = vmatpush1.bf16.msra.mxu0 0
    %344 = vmatprep.mubr.bf16.mxu0 0
    %345 = vmatmul.mubr.bf16.gmra.mrb[0].mxu0 %v307
    %v346 = vpop.f32.mrb[0].mxu0
    %v347 = vadd.f32 0.0, %v346
    %v348 = vpop.f32.mrb[0].mxu0
    %v349 = vpop.f32.mrb[0].mxu0
    %v350 = vpop.f32.mrb[0].mxu0
    %351 = vdwg.mxu0
    %v352 = vpack.c.bf16 %v347, %v299
    %353 = vst.msk [vmem:[#allocation2] sm:$0xff] %vm136, %v352
    %354 = vrot.lane.b32.xlu0 %v132, 120
    %v355 = vpop.permute.xlu0 %354
    %356 = vrot.lane.b32.xlu0 %v132, 88
    %v357 = vpop.permute.xlu0 %356
    %v359 = vsel %vm136, %v355, 0
    %v362 = vsel %vm136, %v357, 0
    %364 = vmatprep.subr.bf16.mxu0 0
    %365 = vmatpush1.bf16.xpose.msra.mxu0 %v362
    %366 = vmatprep.subr.bf16.mxu0 0
    %367 = vmatpush1.bf16.xpose.msra.mxu0 0
    %368 = vmatprep.subr.bf16.mxu0 0
    %369 = vmatpush1.bf16.xpose.msra.mxu0 0
    %370 = vmatprep.subr.bf16.mxu0 0
    %371 = vmatpush1.bf16.xpose.msra.mxu0 0
    %372 = vmatprep.subr.bf16.mxu0 0
    %373 = vmatpush1.bf16.xpose.msra.mxu0 0
    %374 = vmatprep.subr.bf16.mxu0 0
    %375 = vmatpush1.bf16.xpose.msra.mxu0 0
    %376 = vmatprep.subr.bf16.mxu0 0
    %377 = vmatpush1.bf16.xpose.msra.mxu0 0
    %378 = vmatprep.subr.bf16.mxu0 0
    %379 = vmatpush1.bf16.xpose.msra.mxu0 0
    %380 = vmatprep.subr.bf16.mxu0 0
    %381 = vmatpush1.bf16.xpose.msra.mxu0 0
    %382 = vmatprep.subr.bf16.mxu0 0
    %383 = vmatpush1.bf16.xpose.msra.mxu0 0
    %384 = vmatprep.subr.bf16.mxu0 0
    %385 = vmatpush1.bf16.xpose.msra.mxu0 0
    %386 = vmatprep.subr.bf16.mxu0 0
    %387 = vmatpush1.bf16.xpose.msra.mxu0 0
    %388 = vmatprep.subr.bf16.mxu0 0
    %389 = vmatpush1.bf16.xpose.msra.mxu0 0
    %390 = vmatprep.subr.bf16.mxu0 0
    %391 = vmatpush1.bf16.xpose.msra.mxu0 0
    %392 = vmatprep.subr.bf16.mxu0 0
    %393 = vmatpush1.bf16.xpose.msra.mxu0 0
    %394 = vmatprep.subr.bf16.mxu0 0
    %395 = vmatpush1.bf16.xpose.msra.mxu0 0
    %396 = vmatprep.mubr.bf16.mxu0 0
    %397 = vmatmul.mubr.bf16.gmra.mrb[0].mxu0 %v359
    %v398 = vpop.f32.mrb[0].mxu0
    %v399 = vadd.f32 0.0, %v398
    %v400 = vpop.f32.mrb[0].mxu0
    %v401 = vpop.f32.mrb[0].mxu0
    %v402 = vpop.f32.mrb[0].mxu0
    %403 = vdwg.mxu0
    %404 = vrot.lane.b32.xlu0 %v133, 120
    %v405 = vpop.permute.xlu0 %404
    %406 = vrot.lane.b32.xlu0 %v133, 88
    %v407 = vpop.permute.xlu0 %406
    %v409 = vsel %vm136, %v405, 0
    %v412 = vsel %vm136, %v407, 0
    %414 = vmatprep.subr.bf16.mxu0 0
    %415 = vmatpush1.bf16.xpose.msra.mxu0 %v412
    %416 = vmatprep.subr.bf16.mxu0 0
    %417 = vmatpush1.bf16.xpose.msra.mxu0 0
    %418 = vmatprep.subr.bf16.mxu0 0
    %419 = vmatpush1.bf16.xpose.msra.mxu0 0
    %420 = vmatprep.subr.bf16.mxu0 0
    %421 = vmatpush1.bf16.xpose.msra.mxu0 0
    %422 = vmatprep.subr.bf16.mxu0 0
    %423 = vmatpush1.bf16.xpose.msra.mxu0 0
    %424 = vmatprep.subr.bf16.mxu0 0
    %425 = vmatpush1.bf16.xpose.msra.mxu0 0
    %426 = vmatprep.subr.bf16.mxu0 0
    %427 = vmatpush1.bf16.xpose.msra.mxu0 0
    %428 = vmatprep.subr.bf16.mxu0 0
    %429 = vmatpush1.bf16.xpose.msra.mxu0 0
    %430 = vmatprep.subr.bf16.mxu0 0
    %431 = vmatpush1.bf16.xpose.msra.mxu0 0
    %432 = vmatprep.subr.bf16.mxu0 0
    %433 = vmatpush1.bf16.xpose.msra.mxu0 0
    %434 = vmatprep.subr.bf16.mxu0 0
    %435 = vmatpush1.bf16.xpose.msra.mxu0 0
    %436 = vmatprep.subr.bf16.mxu0 0
    %437 = vmatpush1.bf16.xpose.msra.mxu0 0
    %438 = vmatprep.subr.bf16.mxu0 0
    %439 = vmatpush1.bf16.xpose.msra.mxu0 0
    %440 = vmatprep.subr.bf16.mxu0 0
    %441 = vmatpush1.bf16.xpose.msra.mxu0 0
    %442 = vmatprep.subr.bf16.mxu0 0
    %443 = vmatpush1.bf16.xpose.msra.mxu0 0
    %444 = vmatprep.subr.bf16.mxu0 0
    %445 = vmatpush1.bf16.xpose.msra.mxu0 0
    %446 = vmatprep.mubr.bf16.mxu0 0
    %447 = vmatmul.mubr.bf16.gmra.mrb[0].mxu0 %v409
    %v448 = vpop.f32.mrb[0].mxu0
    %v449 = vadd.f32 0.0, %v448
    %v450 = vpop.f32.mrb[0].mxu0
    %v451 = vpop.f32.mrb[0].mxu0
    %v452 = vpop.f32.mrb[0].mxu0
    %453 = vdwg.mxu0
    %v454 = vsel %vm136, %v399, -inf
    %455 = vmax.xlane.f32.xlu0 %v454
    %v456 = vpop.xlane.xlu0 %455
    %v457 = vsel %vm136, %v449, -inf
    %458 = vmax.xlane.f32.xlu0 %v457
    %v459 = vpop.xlane.xlu0 %458
    %v460 = vsub.f32 %v399, %v456
    %v461 = vsub.f32 %v449, %v459
    %v462 = vmul.f32 %v460, 1.442695
    %v463 = vpow.pop %v462
    %v464 = vmul.f32 %v461, 1.442695
    %v465 = vpow.pop %v464
    %v466 = vsel %vm136, %v463, 0.0
    %467 = vadd.xlane.f32.xlu0 %v466
    %v468 = vpop.xlane.xlu0 %467
    %v469 = vsel %vm136, %v465, 0.0
    %470 = vadd.xlane.f32.xlu0 %v469
    %v471 = vpop.xlane.xlu0 %470
    %v472 = vrcp.pop %v468
    %v473 = vrcp.pop %v471
    %v474 = vmul.f32 %v463, %v472
    %v475 = vmul.f32 %v465, %v473
    %v476 = vpack.c.bf16 %v474, %v474
    %v477 = vpack.c.bf16 %v475, %v475
    %478 = vrot.lane.b32.xlu0 %v132, 56
    %v479 = vpop.permute.xlu0 %478
    %v481 = vsel %vm136, %v476, 0
    %v484 = vsel %vm260, %v479, 0
    %486 = vmatprep.subr.bf16.mxu0 0
    %487 = vmatpush1.bf16.msra.mxu0 %v484
    %488 = vmatprep.subr.bf16.mxu0 0
    %489 = vmatpush1.bf16.msra.mxu0 0
    %490 = vmatprep.subr.bf16.mxu0 0
    %491 = vmatpush1.bf16.msra.mxu0 0
    %492 = vmatprep.subr.bf16.mxu0 0
    %493 = vmatpush1.bf16.msra.mxu0 0
    %494 = vmatprep.subr.bf16.mxu0 0
    %495 = vmatpush1.bf16.msra.mxu0 0
    %496 = vmatprep.subr.bf16.mxu0 0
    %497 = vmatpush1.bf16.msra.mxu0 0
    %498 = vmatprep.subr.bf16.mxu0 0
    %499 = vmatpush1.bf16.msra.mxu0 0
    %500 = vmatprep.subr.bf16.mxu0 0
    %501 = vmatpush1.bf16.msra.mxu0 0
    %502 = vmatprep.subr.bf16.mxu0 0
    %503 = vmatpush1.bf16.msra.mxu0 0
    %504 = vmatprep.subr.bf16.mxu0 0
    %505 = vmatpush1.bf16.msra.mxu0 0
    %506 = vmatprep.subr.bf16.mxu0 0
    %507 = vmatpush1.bf16.msra.mxu0 0
    %508 = vmatprep.subr.bf16.mxu0 0
    %509 = vmatpush1.bf16.msra.mxu0 0
    %510 = vmatprep.subr.bf16.mxu0 0
    %511 = vmatpush1.bf16.msra.mxu0 0
    %512 = vmatprep.subr.bf16.mxu0 0
    %513 = vmatpush1.bf16.msra.mxu0 0
    %514 = vmatprep.subr.bf16.mxu0 0
    %515 = vmatpush1.bf16.msra.mxu0 0
    %516 = vmatprep.subr.bf16.mxu0 0
    %517 = vmatpush1.bf16.msra.mxu0 0
    %518 = vmatprep.mubr.bf16.mxu0 0
    %519 = vmatmul.mubr.bf16.gmra.mrb[0].mxu0 %v481
    %v520 = vpop.f32.mrb[0].mxu0
    %v521 = vadd.f32 0.0, %v520
    %v522 = vpop.f32.mrb[0].mxu0
    %v523 = vpop.f32.mrb[0].mxu0
    %v524 = vpop.f32.mrb[0].mxu0
    %525 = vdwg.mxu0
    %526 = vrot.lane.b32.xlu0 %v133, 56
    %v527 = vpop.permute.xlu0 %526
    %v529 = vsel %vm136, %v477, 0
    %v532 = vsel %vm260, %v527, 0
    %534 = vmatprep.subr.bf16.mxu0 0
    %535 = vmatpush1.bf16.msra.mxu0 %v532
    %536 = vmatprep.subr.bf16.mxu0 0
    %537 = vmatpush1.bf16.msra.mxu0 0
    %538 = vmatprep.subr.bf16.mxu0 0
    %539 = vmatpush1.bf16.msra.mxu0 0
    %540 = vmatprep.subr.bf16.mxu0 0
    %541 = vmatpush1.bf16.msra.mxu0 0
    %542 = vmatprep.subr.bf16.mxu0 0
    %543 = vmatpush1.bf16.msra.mxu0 0
    %544 = vmatprep.subr.bf16.mxu0 0
    %545 = vmatpush1.bf16.msra.mxu0 0
    %546 = vmatprep.subr.bf16.mxu0 0
    %547 = vmatpush1.bf16.msra.mxu0 0
    %548 = vmatprep.subr.bf16.mxu0 0
    %549 = vmatpush1.bf16.msra.mxu0 0
    %550 = vmatprep.subr.bf16.mxu0 0
    %551 = vmatpush1.bf16.msra.mxu0 0
    %552 = vmatprep.subr.bf16.mxu0 0
    %553 = vmatpush1.bf16.msra.mxu0 0
    %554 = vmatprep.subr.bf16.mxu0 0
    %555 = vmatpush1.bf16.msra.mxu0 0
    %556 = vmatprep.subr.bf16.mxu0 0
    %557 = vmatpush1.bf16.msra.mxu0 0
    %558 = vmatprep.subr.bf16.mxu0 0
    %559 = vmatpush1.bf16.msra.mxu0 0
    %560 = vmatprep.subr.bf16.mxu0 0
    %561 = vmatpush1.bf16.msra.mxu0 0
    %562 = vmatprep.subr.bf16.mxu0 0
    %563 = vmatpush1.bf16.msra.mxu0 0
    %564 = vmatprep.subr.bf16.mxu0 0
    %565 = vmatpush1.bf16.msra.mxu0 0
    %566 = vmatprep.mubr.bf16.mxu0 0
    %567 = vmatmul.mubr.bf16.gmra.mrb[0].mxu0 %v529
    %v568 = vpop.f32.mrb[0].mxu0
    %v569 = vadd.f32 0.0, %v568
    %v570 = vpop.f32.mrb[0].mxu0
    %v571 = vpop.f32.mrb[0].mxu0
    %v572 = vpop.f32.mrb[0].mxu0
    %573 = vdwg.mxu0
    %v574 = vpack.c.bf16 %v569, %v521
    %576 = vrot.lane.b32.xlu0 %v574, 8
    %v577 = vpop.permute.xlu0 %576
    %vm579 = vcmask 130112
    %580 = vst.msk [vmem:[#allocation2] sm:$0xff] %vm579, %v577
    %581 = vrot.lane.b32.xlu0 %v132, 112
    %v582 = vpop.permute.xlu0 %581
    %583 = vrot.lane.b32.xlu0 %v132, 80
    %v584 = vpop.permute.xlu0 %583
    %v586 = vsel %vm136, %v582, 0
    %v589 = vsel %vm136, %v584, 0
    %591 = vmatprep.subr.bf16.mxu0 0
    %592 = vmatpush1.bf16.xpose.msra.mxu0 %v589
    %593 = vmatprep.subr.bf16.mxu0 0
    %594 = vmatpush1.bf16.xpose.msra.mxu0 0
    %595 = vmatprep.subr.bf16.mxu0 0
    %596 = vmatpush1.bf16.xpose.msra.mxu0 0
    %597 = vmatprep.subr.bf16.mxu0 0
    %598 = vmatpush1.bf16.xpose.msra.mxu0 0
    %599 = vmatprep.subr.bf16.mxu0 0
    %600 = vmatpush1.bf16.xpose.msra.mxu0 0
    %601 = vmatprep.subr.bf16.mxu0 0
    %602 = vmatpush1.bf16.xpose.msra.mxu0 0
    %603 = vmatprep.subr.bf16.mxu0 0
    %604 = vmatpush1.bf16.xpose.msra.mxu0 0
    %605 = vmatprep.subr.bf16.mxu0 0
    %606 = vmatpush1.bf16.xpose.msra.mxu0 0
    %607 = vmatprep.subr.bf16.mxu0 0
    %608 = vmatpush1.bf16.xpose.msra.mxu0 0
    %609 = vmatprep.subr.bf16.mxu0 0
    %610 = vmatpush1.bf16.xpose.msra.mxu0 0
    %611 = vmatprep.subr.bf16.mxu0 0
    %612 = vmatpush1.bf16.xpose.msra.mxu0 0
    %613 = vmatprep.subr.bf16.mxu0 0
    %614 = vmatpush1.bf16.xpose.msra.mxu0 0
    %615 = vmatprep.subr.bf16.mxu0 0
    %616 = vmatpush1.bf16.xpose.msra.mxu0 0
    %617 = vmatprep.subr.bf16.mxu0 0
    %618 = vmatpush1.bf16.xpose.msra.mxu0 0
    %619 = vmatprep.subr.bf16.mxu0 0
    %620 = vmatpush1.bf16.xpose.msra.mxu0 0
    %621 = vmatprep.subr.bf16.mxu0 0
    %622 = vmatpush1.bf16.xpose.msra.mxu0 0
    %623 = vmatprep.mubr.bf16.mxu0 0
    %624 = vmatmul.mubr.bf16.gmra.mrb[0].mxu0 %v586
    %v625 = vpop.f32.mrb[0].mxu0
    %v626 = vadd.f32 0.0, %v625
    %v627 = vpop.f32.mrb[0].mxu0
    %v628 = vpop.f32.mrb[0].mxu0
    %v629 = vpop.f32.mrb[0].mxu0
    %630 = vdwg.mxu0
    %631 = vrot.lane.b32.xlu0 %v133, 112
    %v632 = vpop.permute.xlu0 %631
    %633 = vrot.lane.b32.xlu0 %v133, 80
    %v634 = vpop.permute.xlu0 %633
    %v636 = vsel %vm136, %v632, 0
    %v639 = vsel %vm136, %v634, 0
    %641 = vmatprep.subr.bf16.mxu0 0
    %642 = vmatpush1.bf16.xpose.msra.mxu0 %v639
    %643 = vmatprep.subr.bf16.mxu0 0
    %644 = vmatpush1.bf16.xpose.msra.mxu0 0
    %645 = vmatprep.subr.bf16.mxu0 0
    %646 = vmatpush1.bf16.xpose.msra.mxu0 0
    %647 = vmatprep.subr.bf16.mxu0 0
    %648 = vmatpush1.bf16.xpose.msra.mxu0 0
    %649 = vmatprep.subr.bf16.mxu0 0
    %650 = vmatpush1.bf16.xpose.msra.mxu0 0
    %651 = vmatprep.subr.bf16.mxu0 0
    %652 = vmatpush1.bf16.xpose.msra.mxu0 0
    %653 = vmatprep.subr.bf16.mxu0 0
    %654 = vmatpush1.bf16.xpose.msra.mxu0 0
    %655 = vmatprep.subr.bf16.mxu0 0
    %656 = vmatpush1.bf16.xpose.msra.mxu0 0
    %657 = vmatprep.subr.bf16.mxu0 0
    %658 = vmatpush1.bf16.xpose.msra.mxu0 0
    %659 = vmatprep.subr.bf16.mxu0 0
    %660 = vmatpush1.bf16.xpose.msra.mxu0 0
    %661 = vmatprep.subr.bf16.mxu0 0
    %662 = vmatpush1.bf16.xpose.msra.mxu0 0
    %663 = vmatprep.subr.bf16.mxu0 0
    %664 = vmatpush1.bf16.xpose.msra.mxu0 0
    %665 = vmatprep.subr.bf16.mxu0 0
    %666 = vmatpush1.bf16.xpose.msra.mxu0 0
    %667 = vmatprep.subr.bf16.mxu0 0
    %668 = vmatpush1.bf16.xpose.msra.mxu0 0
    %669 = vmatprep.subr.bf16.mxu0 0
    %670 = vmatpush1.bf16.xpose.msra.mxu0 0
    %671 = vmatprep.subr.bf16.mxu0 0
    %672 = vmatpush1.bf16.xpose.msra.mxu0 0
    %673 = vmatprep.mubr.bf16.mxu0 0
    %674 = vmatmul.mubr.bf16.gmra.mrb[0].mxu0 %v636
    %v675 = vpop.f32.mrb[0].mxu0
    %v676 = vadd.f32 0.0, %v675
    %v677 = vpop.f32.mrb[0].mxu0
    %v678 = vpop.f32.mrb[0].mxu0
    %v679 = vpop.f32.mrb[0].mxu0
    %680 = vdwg.mxu0
    %v681 = vsel %vm136, %v626, -inf
    %682 = vmax.xlane.f32.xlu0 %v681
    %v683 = vpop.xlane.xlu0 %682
    %v684 = vsel %vm136, %v676, -inf
    %685 = vmax.xlane.f32.xlu0 %v684
    %v686 = vpop.xlane.xlu0 %685
    %v687 = vsub.f32 %v626, %v683
    %v688 = vsub.f32 %v676, %v686
    %v689 = vmul.f32 %v687, 1.442695
    %v690 = vpow.pop %v689
    %v691 = vmul.f32 %v688, 1.442695
    %v692 = vpow.pop %v691
    %v693 = vsel %vm136, %v690, 0.0
    %694 = vadd.xlane.f32.xlu0 %v693
    %v695 = vpop.xlane.xlu0 %694
    %v696 = vsel %vm136, %v692, 0.0
    %697 = vadd.xlane.f32.xlu0 %v696
    %v698 = vpop.xlane.xlu0 %697
    %v699 = vrcp.pop %v695
    %v700 = vrcp.pop %v698
    %v701 = vmul.f32 %v690, %v699
    %v702 = vmul.f32 %v692, %v700
    %v703 = vpack.c.bf16 %v701, %v701
    %v704 = vpack.c.bf16 %v702, %v702
    %705 = vrot.lane.b32.xlu0 %v132, 48
    %v706 = vpop.permute.xlu0 %705
    %v708 = vsel %vm136, %v703, 0
    %v711 = vsel %vm260, %v706, 0
    %713 = vmatprep.subr.bf16.mxu0 0
    %714 = vmatpush1.bf16.msra.mxu0 %v711
    %715 = vmatprep.subr.bf16.mxu0 0
    %716 = vmatpush1.bf16.msra.mxu0 0
    %717 = vmatprep.subr.bf16.mxu0 0
    %718 = vmatpush1.bf16.msra.mxu0 0
    %719 = vmatprep.subr.bf16.mxu0 0
    %720 = vmatpush1.bf16.msra.mxu0 0
    %721 = vmatprep.subr.bf16.mxu0 0
    %722 = vmatpush1.bf16.msra.mxu0 0
    %723 = vmatprep.subr.bf16.mxu0 0
    %724 = vmatpush1.bf16.msra.mxu0 0
    %725 = vmatprep.subr.bf16.mxu0 0
    %726 = vmatpush1.bf16.msra.mxu0 0
    %727 = vmatprep.subr.bf16.mxu0 0
    %728 = vmatpush1.bf16.msra.mxu0 0
    %729 = vmatprep.subr.bf16.mxu0 0
    %730 = vmatpush1.bf16.msra.mxu0 0
    %731 = vmatprep.subr.bf16.mxu0 0
    %732 = vmatpush1.bf16.msra.mxu0 0
    %733 = vmatprep.subr.bf16.mxu0 0
    %734 = vmatpush1.bf16.msra.mxu0 0
    %735 = vmatprep.subr.bf16.mxu0 0
    %736 = vmatpush1.bf16.msra.mxu0 0
    %737 = vmatprep.subr.bf16.mxu0 0
    %738 = vmatpush1.bf16.msra.mxu0 0
    %739 = vmatprep.subr.bf16.mxu0 0
    %740 = vmatpush1.bf16.msra.mxu0 0
    %741 = vmatprep.subr.bf16.mxu0 0
    %742 = vmatpush1.bf16.msra.mxu0 0
    %743 = vmatprep.subr.bf16.mxu0 0
    %744 = vmatpush1.bf16.msra.mxu0 0
    %745 = vmatprep.mubr.bf16.mxu0 0
    %746 = vmatmul.mubr.bf16.gmra.mrb[0].mxu0 %v708
    %v747 = vpop.f32.mrb[0].mxu0
    %v748 = vadd.f32 0.0, %v747
    %v749 = vpop.f32.mrb[0].mxu0
    %v750 = vpop.f32.mrb[0].mxu0
    %v751 = vpop.f32.mrb[0].mxu0
    %752 = vdwg.mxu0
    %753 = vrot.lane.b32.xlu0 %v133, 48
    %v754 = vpop.permute.xlu0 %753
    %v756 = vsel %vm136, %v704, 0
    %v759 = vsel %vm260, %v754, 0
    %761 = vmatprep.subr.bf16.mxu0 0
    %762 = vmatpush1.bf16.msra.mxu0 %v759
    %763 = vmatprep.subr.bf16.mxu0 0
    %764 = vmatpush1.bf16.msra.mxu0 0
    %765 = vmatprep.subr.bf16.mxu0 0
    %766 = vmatpush1.bf16.msra.mxu0 0
    %767 = vmatprep.subr.bf16.mxu0 0
    %768 = vmatpush1.bf16.msra.mxu0 0
    %769 = vmatprep.subr.bf16.mxu0 0
    %770 = vmatpush1.bf16.msra.mxu0 0
    %771 = vmatprep.subr.bf16.mxu0 0
    %772 = vmatpush1.bf16.msra.mxu0 0
    %773 = vmatprep.subr.bf16.mxu0 0
    %774 = vmatpush1.bf16.msra.mxu0 0
    %775 = vmatprep.subr.bf16.mxu0 0
    %776 = vmatpush1.bf16.msra.mxu0 0
    %777 = vmatprep.subr.bf16.mxu0 0
    %778 = vmatpush1.bf16.msra.mxu0 0
    %779 = vmatprep.subr.bf16.mxu0 0
    %780 = vmatpush1.bf16.msra.mxu0 0
    %781 = vmatprep.subr.bf16.mxu0 0
    %782 = vmatpush1.bf16.msra.mxu0 0
    %783 = vmatprep.subr.bf16.mxu0 0
    %784 = vmatpush1.bf16.msra.mxu0 0
    %785 = vmatprep.subr.bf16.mxu0 0
    %786 = vmatpush1.bf16.msra.mxu0 0
    %787 = vmatprep.subr.bf16.mxu0 0
    %788 = vmatpush1.bf16.msra.mxu0 0
    %789 = vmatprep.subr.bf16.mxu0 0
    %790 = vmatpush1.bf16.msra.mxu0 0
    %791 = vmatprep.subr.bf16.mxu0 0
    %792 = vmatpush1.bf16.msra.mxu0 0
    %793 = vmatprep.mubr.bf16.mxu0 0
    %794 = vmatmul.mubr.bf16.gmra.mrb[0].mxu0 %v756
    %v795 = vpop.f32.mrb[0].mxu0
    %v796 = vadd.f32 0.0, %v795
    %v797 = vpop.f32.mrb[0].mxu0
    %v798 = vpop.f32.mrb[0].mxu0
    %v799 = vpop.f32.mrb[0].mxu0
    %800 = vdwg.mxu0
    %v801 = vpack.c.bf16 %v796, %v748
    %803 = vrot.lane.b32.xlu0 %v801, 16
    %v804 = vpop.permute.xlu0 %803
    %vm806 = vcmask 195712
    %807 = vst.msk [vmem:[#allocation2] sm:$0xff] %vm806, %v804
    %808 = vrot.lane.b32.xlu0 %v132, 104
    %v809 = vpop.permute.xlu0 %808
    %810 = vrot.lane.b32.xlu0 %v132, 72
    %v811 = vpop.permute.xlu0 %810
    %v813 = vsel %vm136, %v809, 0
    %v816 = vsel %vm136, %v811, 0
    %818 = vmatprep.subr.bf16.mxu0 0
    %819 = vmatpush1.bf16.xpose.msra.mxu0 %v816
    %820 = vmatprep.subr.bf16.mxu0 0
    %821 = vmatpush1.bf16.xpose.msra.mxu0 0
    %822 = vmatprep.subr.bf16.mxu0 0
    %823 = vmatpush1.bf16.xpose.msra.mxu0 0
    %824 = vmatprep.subr.bf16.mxu0 0
    %825 = vmatpush1.bf16.xpose.msra.mxu0 0
    %826 = vmatprep.subr.bf16.mxu0 0
    %827 = vmatpush1.bf16.xpose.msra.mxu0 0
    %828 = vmatprep.subr.bf16.mxu0 0
    %829 = vmatpush1.bf16.xpose.msra.mxu0 0
    %830 = vmatprep.subr.bf16.mxu0 0
    %831 = vmatpush1.bf16.xpose.msra.mxu0 0
    %832 = vmatprep.subr.bf16.mxu0 0
    %833 = vmatpush1.bf16.xpose.msra.mxu0 0
    %834 = vmatprep.subr.bf16.mxu0 0
    %835 = vmatpush1.bf16.xpose.msra.mxu0 0
    %836 = vmatprep.subr.bf16.mxu0 0
    %837 = vmatpush1.bf16.xpose.msra.mxu0 0
    %838 = vmatprep.subr.bf16.mxu0 0
    %839 = vmatpush1.bf16.xpose.msra.mxu0 0
    %840 = vmatprep.subr.bf16.mxu0 0
    %841 = vmatpush1.bf16.xpose.msra.mxu0 0
    %842 = vmatprep.subr.bf16.mxu0 0
    %843 = vmatpush1.bf16.xpose.msra.mxu0 0
    %844 = vmatprep.subr.bf16.mxu0 0
    %845 = vmatpush1.bf16.xpose.msra.mxu0 0
    %846 = vmatprep.subr.bf16.mxu0 0
    %847 = vmatpush1.bf16.xpose.msra.mxu0 0
    %848 = vmatprep.subr.bf16.mxu0 0
    %849 = vmatpush1.bf16.xpose.msra.mxu0 0
    %850 = vmatprep.mubr.bf16.mxu0 0
    %851 = vmatmul.mubr.bf16.gmra.mrb[0].mxu0 %v813
    %v852 = vpop.f32.mrb[0].mxu0
    %v853 = vadd.f32 0.0, %v852
    %v854 = vpop.f32.mrb[0].mxu0
    %v855 = vpop.f32.mrb[0].mxu0
    %v856 = vpop.f32.mrb[0].mxu0
    %857 = vdwg.mxu0
    %858 = vrot.lane.b32.xlu0 %v133, 104
    %v859 = vpop.permute.xlu0 %858
    %860 = vrot.lane.b32.xlu0 %v133, 72
    %v861 = vpop.permute.xlu0 %860
    %v863 = vsel %vm136, %v859, 0
    %v866 = vsel %vm136, %v861, 0
    %868 = vmatprep.subr.bf16.mxu0 0
    %869 = vmatpush1.bf16.xpose.msra.mxu0 %v866
    %870 = vmatprep.subr.bf16.mxu0 0
    %871 = vmatpush1.bf16.xpose.msra.mxu0 0
    %872 = vmatprep.subr.bf16.mxu0 0
    %873 = vmatpush1.bf16.xpose.msra.mxu0 0
    %874 = vmatprep.subr.bf16.mxu0 0
    %875 = vmatpush1.bf16.xpose.msra.mxu0 0
    %876 = vmatprep.subr.bf16.mxu0 0
    %877 = vmatpush1.bf16.xpose.msra.mxu0 0
    %878 = vmatprep.subr.bf16.mxu0 0
    %879 = vmatpush1.bf16.xpose.msra.mxu0 0
    %880 = vmatprep.subr.bf16.mxu0 0
    %881 = vmatpush1.bf16.xpose.msra.mxu0 0
    %882 = vmatprep.subr.bf16.mxu0 0
    %883 = vmatpush1.bf16.xpose.msra.mxu0 0
    %884 = vmatprep.subr.bf16.mxu0 0
    %885 = vmatpush1.bf16.xpose.msra.mxu0 0
    %886 = vmatprep.subr.bf16.mxu0 0
    %887 = vmatpush1.bf16.xpose.msra.mxu0 0
    %888 = vmatprep.subr.bf16.mxu0 0
    %889 = vmatpush1.bf16.xpose.msra.mxu0 0
    %890 = vmatprep.subr.bf16.mxu0 0
    %891 = vmatpush1.bf16.xpose.msra.mxu0 0
    %892 = vmatprep.subr.bf16.mxu0 0
    %893 = vmatpush1.bf16.xpose.msra.mxu0 0
    %894 = vmatprep.subr.bf16.mxu0 0
    %895 = vmatpush1.bf16.xpose.msra.mxu0 0
    %896 = vmatprep.subr.bf16.mxu0 0
    %897 = vmatpush1.bf16.xpose.msra.mxu0 0
    %898 = vmatprep.subr.bf16.mxu0 0
    %899 = vmatpush1.bf16.xpose.msra.mxu0 0
    %900 = vmatprep.mubr.bf16.mxu0 0
    %901 = vmatmul.mubr.bf16.gmra.mrb[0].mxu0 %v863
    %v902 = vpop.f32.mrb[0].mxu0
    %v903 = vadd.f32 0.0, %v902
    %v904 = vpop.f32.mrb[0].mxu0
    %v905 = vpop.f32.mrb[0].mxu0
    %v906 = vpop.f32.mrb[0].mxu0
    %907 = vdwg.mxu0
    %v908 = vsel %vm136, %v853, -inf
    %909 = vmax.xlane.f32.xlu0 %v908
    %v910 = vpop.xlane.xlu0 %909
    %v911 = vsel %vm136, %v903, -inf
    %912 = vmax.xlane.f32.xlu0 %v911
    %v913 = vpop.xlane.xlu0 %912
    %v914 = vsub.f32 %v853, %v910
    %v915 = vsub.f32 %v903, %v913
    %v916 = vmul.f32 %v914, 1.442695
    %v917 = vpow.pop %v916
    %v918 = vmul.f32 %v915, 1.442695
    %v919 = vpow.pop %v918
    %v920 = vsel %vm136, %v917, 0.0
    %921 = vadd.xlane.f32.xlu0 %v920
    %v922 = vpop.xlane.xlu0 %921
    %v923 = vsel %vm136, %v919, 0.0
    %924 = vadd.xlane.f32.xlu0 %v923
    %v925 = vpop.xlane.xlu0 %924
    %v926 = vrcp.pop %v922
    %v927 = vrcp.pop %v925
    %v928 = vmul.f32 %v917, %v926
    %v929 = vmul.f32 %v919, %v927
    %v930 = vpack.c.bf16 %v928, %v928
    %v931 = vpack.c.bf16 %v929, %v929
    %932 = vrot.lane.b32.xlu0 %v132, 40
    %v933 = vpop.permute.xlu0 %932
    %v935 = vsel %vm136, %v930, 0
    %v938 = vsel %vm260, %v933, 0
    %940 = vmatprep.subr.bf16.mxu0 0
    %941 = vmatpush1.bf16.msra.mxu0 %v938
    %942 = vmatprep.subr.bf16.mxu0 0
    %943 = vmatpush1.bf16.msra.mxu0 0
    %944 = vmatprep.subr.bf16.mxu0 0
    %945 = vmatpush1.bf16.msra.mxu0 0
    %946 = vmatprep.subr.bf16.mxu0 0
    %947 = vmatpush1.bf16.msra.mxu0 0
    %948 = vmatprep.subr.bf16.mxu0 0
    %949 = vmatpush1.bf16.msra.mxu0 0
    %950 = vmatprep.subr.bf16.mxu0 0
    %951 = vmatpush1.bf16.msra.mxu0 0
    %952 = vmatprep.subr.bf16.mxu0 0
    %953 = vmatpush1.bf16.msra.mxu0 0
    %954 = vmatprep.subr.bf16.mxu0 0
    %955 = vmatpush1.bf16.msra.mxu0 0
    %956 = vmatprep.subr.bf16.mxu0 0
    %957 = vmatpush1.bf16.msra.mxu0 0
    %958 = vmatprep.subr.bf16.mxu0 0
    %959 = vmatpush1.bf16.msra.mxu0 0
    %960 = vmatprep.subr.bf16.mxu0 0
    %961 = vmatpush1.bf16.msra.mxu0 0
    %962 = vmatprep.subr.bf16.mxu0 0
    %963 = vmatpush1.bf16.msra.mxu0 0
    %964 = vmatprep.subr.bf16.mxu0 0
    %965 = vmatpush1.bf16.msra.mxu0 0
    %966 = vmatprep.subr.bf16.mxu0 0
    %967 = vmatpush1.bf16.msra.mxu0 0
    %968 = vmatprep.subr.bf16.mxu0 0
    %969 = vmatpush1.bf16.msra.mxu0 0
    %970 = vmatprep.subr.bf16.mxu0 0
    %971 = vmatpush1.bf16.msra.mxu0 0
    %972 = vmatprep.mubr.bf16.mxu0 0
    %973 = vmatmul.mubr.bf16.gmra.mrb[0].mxu0 %v935
    %v974 = vpop.f32.mrb[0].mxu0
    %v975 = vadd.f32 0.0, %v974
    %v976 = vpop.f32.mrb[0].mxu0
    %v977 = vpop.f32.mrb[0].mxu0
    %v978 = vpop.f32.mrb[0].mxu0
    %979 = vdwg.mxu0
    %980 = vrot.lane.b32.xlu0 %v133, 40
    %v981 = vpop.permute.xlu0 %980
    %v983 = vsel %vm136, %v931, 0
    %v986 = vsel %vm260, %v981, 0
    %988 = vmatprep.subr.bf16.mxu0 0
    %989 = vmatpush1.bf16.msra.mxu0 %v986
    %990 = vmatprep.subr.bf16.mxu0 0
    %991 = vmatpush1.bf16.msra.mxu0 0
    %992 = vmatprep.subr.bf16.mxu0 0
    %993 = vmatpush1.bf16.msra.mxu0 0
    %994 = vmatprep.subr.bf16.mxu0 0
    %995 = vmatpush1.bf16.msra.mxu0 0
    %996 = vmatprep.subr.bf16.mxu0 0
    %997 = vmatpush1.bf16.msra.mxu0 0
    %998 = vmatprep.subr.bf16.mxu0 0
    %999 = vmatpush1.bf16.msra.mxu0 0
    %1000 = vmatprep.subr.bf16.mxu0 0
    %1001 = vmatpush1.bf16.msra.mxu0 0
    %1002 = vmatprep.subr.bf16.mxu0 0
    %1003 = vmatpush1.bf16.msra.mxu0 0
    %1004 = vmatprep.subr.bf16.mxu0 0
    %1005 = vmatpush1.bf16.msra.mxu0 0
    %1006 = vmatprep.subr.bf16.mxu0 0
    %1007 = vmatpush1.bf16.msra.mxu0 0
    %1008 = vmatprep.subr.bf16.mxu0 0
    %1009 = vmatpush1.bf16.msra.mxu0 0
    %1010 = vmatprep.subr.bf16.mxu0 0
    %1011 = vmatpush1.bf16.msra.mxu0 0
    %1012 = vmatprep.subr.bf16.mxu0 0
    %1013 = vmatpush1.bf16.msra.mxu0 0
    %1014 = vmatprep.subr.bf16.mxu0 0
    %1015 = vmatpush1.bf16.msra.mxu0 0
    %1016 = vmatprep.subr.bf16.mxu0 0
    %1017 = vmatpush1.bf16.msra.mxu0 0
    %1018 = vmatprep.subr.bf16.mxu0 0
    %1019 = vmatpush1.bf16.msra.mxu0 0
    %1020 = vmatprep.mubr.bf16.mxu0 0
    %1021 = vmatmul.mubr.bf16.gmra.mrb[0].mxu0 %v983
    %v1022 = vpop.f32.mrb[0].mxu0
    %v1023 = vadd.f32 0.0, %v1022
    %v1024 = vpop.f32.mrb[0].mxu0
    %v1025 = vpop.f32.mrb[0].mxu0
    %v1026 = vpop.f32.mrb[0].mxu0
    %1027 = vdwg.mxu0
    %v1028 = vpack.c.bf16 %v1023, %v975
    %1030 = vrot.lane.b32.xlu0 %v1028, 24
    %v1031 = vpop.permute.xlu0 %1030
    %vm1033 = vcmask 261312
    %1034 = vst.msk [vmem:[#allocation2] sm:$0xff] %vm1033, %v1031
    %v1035 = vld [vmem:[#allocation2] sm:$0xff]
    %v1036 = vld [vmem:[#allocation8] sm:$0xf]
    %v1037 = vld [vmem:[#allocation8 + $0x4] sm:$0xf]
    %v1038 = vld [vmem:[#allocation8 + $0x8] sm:$0xf]
    %v1039 = vld [vmem:[#allocation8 + $0xc] sm:$0xf]
    %v1040 = vld [vmem:[%s3] sm:$0x1]
    %v1042 = vlaneseq
    %v1043 = vshrl.u32 %v1042, 7
    %v1044 = vsub.s32 0, %v1043
    %v1045 = vrot.slane %v1040, %v1044
    %v1051 = vunpack.c.l.b16 %v1036
    %v1052 = vunpack.c.l.b16 %v1037
    %v1053 = vunpack.c.l.b16 %v1038
    %v1054 = vunpack.c.l.b16 %v1039
    %v1055 = vpack.c.b16 %v1052, %v1051
    %v1056 = vpack.c.b16 %v1054, %v1053
    %v1060 = vsel %vm83, %v1035, 0
    %1062 = vmatprep.subr.bf16.mxu0 0
    %1063 = vmatpush1.bf16.msra.mxu0 %v1055
    %1064 = vmatprep.subr.bf16.mxu0 0
    %1065 = vmatpush1.bf16.msra.mxu0 %v1056
    %1066 = vmatprep.subr.bf16.mxu0 0
    %1067 = vmatpush1.bf16.msra.mxu0 0
    %1068 = vmatprep.subr.bf16.mxu0 0
    %1069 = vmatpush1.bf16.msra.mxu0 0
    %1070 = vmatprep.subr.bf16.mxu0 0
    %1071 = vmatpush1.bf16.msra.mxu0 0
    %1072 = vmatprep.subr.bf16.mxu0 0
    %1073 = vmatpush1.bf16.msra.mxu0 0
    %1074 = vmatprep.subr.bf16.mxu0 0
    %1075 = vmatpush1.bf16.msra.mxu0 0
    %1076 = vmatprep.subr.bf16.mxu0 0
    %1077 = vmatpush1.bf16.msra.mxu0 0
    %1078 = vmatprep.subr.bf16.mxu0 0
    %1079 = vmatpush1.bf16.msra.mxu0 0
    %1080 = vmatprep.subr.bf16.mxu0 0
    %1081 = vmatpush1.bf16.msra.mxu0 0
    %1082 = vmatprep.subr.bf16.mxu0 0
    %1083 = vmatpush1.bf16.msra.mxu0 0
    %1084 = vmatprep.subr.bf16.mxu0 0
    %1085 = vmatpush1.bf16.msra.mxu0 0
    %1086 = vmatprep.subr.bf16.mxu0 0
    %1087 = vmatpush1.bf16.msra.mxu0 0
    %1088 = vmatprep.subr.bf16.mxu0 0
    %1089 = vmatpush1.bf16.msra.mxu0 0
    %1090 = vmatprep.subr.bf16.mxu0 0
    %1091 = vmatpush1.bf16.msra.mxu0 0
    %1092 = vmatprep.subr.bf16.mxu0 0
    %1093 = vmatpush1.bf16.msra.mxu0 0
    %1094 = vmatprep.mubr.bf16.mxu0 0
    %1095 = vmatmul.mubr.bf16.gmra.mrb[0].mxu0 %v1060
    %v1096 = vpop.f32.mrb[0].mxu0
    %v1097 = vadd.f32 %v1045, %v1096
    %v1098 = vpop.f32.mrb[0].mxu0
    %v1099 = vpop.f32.mrb[0].mxu0
    %v1100 = vadd.f32 %v1045, %v1099
    %v1101 = vpop.f32.mrb[0].mxu0
    %1102 = vdwg.mxu0
    %1103 = vst.msk [vmem:[#allocation9] sm:$0xff] %vm83, %v1097
    %1104 = vst.msk [vmem:[#allocation9 + $0x8] sm:$0xff] %vm83, %v1100
    // Predicated region
    $region30: #{tpu_custom_call.1} parent=1 // pred_check
      _
    $region31: #{tpu_custom_call.1} parent=1 // pred_check_branch
      %1106 = sbr.rel (0) target = $region33
    $region32: #{tpu_custom_call.1} parent=1 // pred_region
      %s1108 = ssub.s32 256, 256
      %1109 = vsyncadd [#allocation5], %s1108
      %s1110 = sshll.u32 [#allocation9], 4
      %s1111 = int_to_ptr.vmem [resolvable:$true] %s1110
      %1116 = dma.vmem_to_hbm [thread:$0]  %s1111, 256, %s4, [#allocation5], 128, 128, 8
    $region33: #{tpu_custom_call.1} parent=1 // pred_fallthru
      _
    // Predicated region
    $region34: #{tpu_custom_call.1} parent=1 // pred_check
      _
    $region35: #{tpu_custom_call.1} parent=1 // pred_check_branch
      %1118 = sbr.rel (0) target = $region37
    $region36: #{tpu_custom_call.1} parent=1 // pred_region
      %1119 = dma.done [#allocation5], 256
    $region37: #{tpu_custom_call.1} parent=1 // pred_fallthru
      _
    %1120 = vsyncpa [#allocation4], 1
    %1121 = vsyncpa [#allocation7], 1
    %1122 = vsyncpa [#allocation5], 1

// kernel: tpu_custom_call.1
$region0: #{tpu_custom_call.1}
  #allocation0 [shape = 'u32[]', space=smem, size = 0x4, offset = 0x4, fixed_abs, tag = 'smem constant byte address 0x4 - core index']
  #allocation1 [shape = 'u32[144,128]{1,0:T(1,128)}', space=vmem, size = 0x12000, scoped, tag = 'internal scratch']
  #allocation2 [shape = 'bf16[16,32]{1,0:T(16,128)(2,1)}', space=vmem, size = 0x1000, scoped, tag = 'scratch operand']
  %s0 = inlined_call_operand.hbm [shape: bf16[16,32], index: 0, kind: input, shape index: {}]
  %s1 = inlined_call_operand.hbm [shape: bf16[32,96], index: 1, kind: input, shape index: {}]
  %s2 = inlined_call_operand.hbm [shape: bf16[32,32], index: 2, kind: input, shape index: {}]
  %s3 = inlined_call_operand.vmem [shape: f32[1,32], index: 3, kind: input, shape index: {}]
  %s4 = inlined_call_operand.hbm [shape: f32[16,32], index: 4, kind: output, shape index: {}]
  %s5 = sld [smem:[#allocation0]]
  $region38: #{tpu_custom_call.1} parent=0
    _
  %s7 = ssub.s32 1, %s5
  %s8 = scalar_select 0, %s7, %s5
  $region1: #{tpu_custom_call.1} parent=0
    #allocation3 [shape = 'u8[4096]{0}', space=vmem, size = 0x1000, scoped, tag = 'input window, operand 0, single buffered']
    #allocation4 [shape = 's32[1]{0}', space=sflag, size = 0x4, scoped, tag = 'scoped memory for tpu_custom_call.1']
    #allocation5 [shape = 's32[1]{0}', space=sflag, size = 0x4, scoped, tag = 'scoped memory for tpu_custom_call.1']
    #allocation6 [shape = 'u8[8192]{0}', space=vmem, size = 0x2000, scoped, tag = 'input window, operand 1, single buffered']
    #allocation7 [shape = 's32[1]{0}', space=sflag, size = 0x4, scoped, tag = 'scoped memory for tpu_custom_call.1']
    #allocation8 [shape = 'u8[8192]{0}', space=vmem, size = 0x2000, scoped, tag = 'input window, operand 2, single buffered']
    #allocation9 [shape = 'u8[8192]{0}', space=vmem, size = 0x2000, scoped, tag = 'output window, operand 0, single buffered']
    %9 = vsyncpa [#allocation4], 0
    %10 = vsyncpa [#allocation7], 0
    %11 = vsyncpa [#allocation5], 0
    // Predicated region
    $region2: #{tpu_custom_call.1} parent=1 // pred_check
      _
    $region3: #{tpu_custom_call.1} parent=1 // pred_check_branch
      %13 = sbr.rel (0) target = $region5
    $region4: #{tpu_custom_call.1} parent=1 // pred_region
      %s15 = ssub.s32 128, 128
      %16 = vsyncadd [#allocation4], %s15
      %s17 = sshll.u32 [#allocation3], 4
      %s18 = int_to_ptr.vmem [resolvable:$true] %s17
      %23 = dma.hbm_to_vmem [thread:$0]  %s0, 128, %s18, [#allocation4], 64, 64, 4
    $region5: #{tpu_custom_call.1} parent=1 // pred_fallthru
      _
    // Predicated region
    $region6: #{tpu_custom_call.1} parent=1 // pred_check
      _
    $region7: #{tpu_custom_call.1} parent=1 // pred_check_branch
      %25 = sbr.rel (0) target = $region9
    $region8: #{tpu_custom_call.1} parent=1 // pred_region
      %s27 = ssub.s32 256, 256
      %28 = vsyncadd [#allocation7], %s27
      %s29 = sshll.u32 [#allocation6], 4
      %s30 = int_to_ptr.vmem [resolvable:$true] %s29
      %35 = dma.hbm_to_vmem [thread:$0]  %s1, 256, %s30, [#allocation7], 64, 64, 4
    $region9: #{tpu_custom_call.1} parent=1 // pred_fallthru
      _
    // Predicated region
    $region10: #{tpu_custom_call.1} parent=1 // pred_check
      _
    $region11: #{tpu_custom_call.1} parent=1 // pred_check_branch
      %37 = sbr.rel (0) target = $region13
    $region12: #{tpu_custom_call.1} parent=1 // pred_region
      %s39 = ssub.s32 256, 256
      %40 = vsyncadd [#allocation7], %s39
      %s41 = sshll.u32 [#allocation8], 4
      %s42 = int_to_ptr.vmem [resolvable:$true] %s41
      %47 = dma.hbm_to_vmem [thread:$0]  %s2, 256, %s42, [#allocation7], 64, 64, 4
    $region13: #{tpu_custom_call.1} parent=1 // pred_fallthru
      _
    // Predicated region
    $region14: #{tpu_custom_call.1} parent=1 // pred_check
      _
    $region15: #{tpu_custom_call.1} parent=1 // pred_check_branch
      %49 = sbr.rel (0) target = $region17
    $region16: #{tpu_custom_call.1} parent=1 // pred_region
      _
    $region17: #{tpu_custom_call.1} parent=1 // pred_fallthru
      _
    // Predicated region
    $region18: #{tpu_custom_call.1} parent=1 // pred_check
      _
    $region19: #{tpu_custom_call.1} parent=1 // pred_check_branch
      %51 = sbr.rel (0) target = $region21
    $region20: #{tpu_custom_call.1} parent=1 // pred_region
      %52 = dma.done [#allocation4], 128
    $region21: #{tpu_custom_call.1} parent=1 // pred_fallthru
      _
    // Predicated region
    $region22: #{tpu_custom_call.1} parent=1 // pred_check
      _
    $region23: #{tpu_custom_call.1} parent=1 // pred_check_branch
      %54 = sbr.rel (0) target = $region25
    $region24: #{tpu_custom_call.1} parent=1 // pred_region
      %55 = dma.done [#allocation7], 256
    $region25: #{tpu_custom_call.1} parent=1 // pred_fallthru
      _
    // Predicated region
    $region26: #{tpu_custom_call.1} parent=1 // pred_check
      _
    $region27: #{tpu_custom_call.1} parent=1 // pred_check_branch
      %57 = sbr.rel (0) target = $region29
    $region28: #{tpu_custom_call.1} parent=1 // pred_region
      %58 = dma.done [#allocation7], 256
    $region29: #{tpu_custom_call.1} parent=1 // pred_fallthru
      _
    %v60 = vld [vmem:[#allocation3] sm:$0xf]
    %v61 = vld [vmem:[#allocation3 + $0x4] sm:$0xf]
    %v62 = vld [vmem:[#allocation6] sm:$0xf]
    %v63 = vld [vmem:[#allocation6 + $0x4] sm:$0xf]
    %v64 = vld [vmem:[#allocation6 + $0x8] sm:$0xf]
    %v65 = vld [vmem:[#allocation6 + $0xc] sm:$0xf]
    %v68 = vunpack.c.l.b16 %v60
    %v69 = vunpack.c.l.b16 %v61
    %v70 = vpack.c.b16 %v69, %v68
    %v75 = vunpack.c.l.b16 %v62
    %v76 = vunpack.c.l.b16 %v63
    %v77 = vunpack.c.l.b16 %v64
    %v78 = vunpack.c.l.b16 %v65
    %v79 = vpack.c.b16 %v76, %v75
    %v80 = vpack.c.b16 %v78, %v77
    %vm83 = vcmask 261120
    %v85 = vsel %vm83, %v70, 0
    %87 = vmatprep.subr.bf16.mxu0 0
    %88 = vmatpush1.bf16.msra.mxu0 %v79
    %89 = vmatprep.subr.bf16.mxu0 0
    %90 = vmatpush1.bf16.msra.mxu0 %v80
    %91 = vmatprep.subr.bf16.mxu0 0
    %92 = vmatpush1.bf16.msra.mxu0 0
    %93 = vmatprep.subr.bf16.mxu0 0
    %94 = vmatpush1.bf16.msra.mxu0 0
    %95 = vmatprep.subr.bf16.mxu0 0
    %96 = vmatpush1.bf16.msra.mxu0 0
    %97 = vmatprep.subr.bf16.mxu0 0
    %98 = vmatpush1.bf16.msra.mxu0 0
    %99 = vmatprep.subr.bf16.mxu0 0
    %100 = vmatpush1.bf16.msra.mxu0 0
    %101 = vmatprep.subr.bf16.mxu0 0
    %102 = vmatpush1.bf16.msra.mxu0 0
    %103 = vmatprep.subr.bf16.mxu0 0
    %104 = vmatpush1.bf16.msra.mxu0 0
    %105 = vmatprep.subr.bf16.mxu0 0
    %106 = vmatpush1.bf16.msra.mxu0 0
    %107 = vmatprep.subr.bf16.mxu0 0
    %108 = vmatpush1.bf16.msra.mxu0 0
    %109 = vmatprep.subr.bf16.mxu0 0
    %110 = vmatpush1.bf16.msra.mxu0 0
    %111 = vmatprep.subr.bf16.mxu0 0
    %112 = vmatpush1.bf16.msra.mxu0 0
    %113 = vmatprep.subr.bf16.mxu0 0
    %114 = vmatpush1.bf16.msra.mxu0 0
    %115 = vmatprep.subr.bf16.mxu0 0
    %116 = vmatpush1.bf16.msra.mxu0 0
    %117 = vmatprep.subr.bf16.mxu0 0
    %118 = vmatpush1.bf16.msra.mxu0 0
    %119 = vmatprep.mubr.bf16.mxu0 0
    %120 = vmatmul.mubr.bf16.gmra.mrb[0].mxu0 %v85
    %v121 = vpop.f32.mrb[0].mxu0
    %v122 = vadd.f32 0.0, %v121
    %v123 = vpop.f32.mrb[0].mxu0
    %v124 = vpop.f32.mrb[0].mxu0
    %v125 = vadd.f32 0.0, %v124
    %v126 = vpop.f32.mrb[0].mxu0
    %127 = vdwg.mxu0
    %v128 = vpack.c.bf16 %v125, %v122
    %v130 = vunpack.c.l.b16 %v128
    %v131 = vunpack.c.h.b16 %v128
    %v132 = vpack.c.b16 %v130, %v130
    %v133 = vpack.c.b16 %v131, %v131
    %134 = vrot.lane.b32.xlu0 %v132, 96
    %v135 = vpop.permute.xlu0 %134
    %vm136 = vcmask 64512
    %v138 = vsel %vm136, %v132, 0
    %v141 = vsel %vm136, %v135, 0
    %143 = vmatprep.subr.bf16.mxu0 0
    %144 = vmatpush1.bf16.xpose.msra.mxu0 %v141
    %145 = vmatprep.subr.bf16.mxu0 0
    %146 = vmatpush1.bf16.xpose.msra.mxu0 0
    %147 = vmatprep.subr.bf16.mxu0 0
    %148 = vmatpush1.bf16.xpose.msra.mxu0 0
    %149 = vmatprep.subr.bf16.mxu0 0
    %150 = vmatpush1.bf16.xpose.msra.mxu0 0
    %151 = vmatprep.subr.bf16.mxu0 0
    %152 = vmatpush1.bf16.xpose.msra.mxu0 0
    %153 = vmatprep.subr.bf16.mxu0 0
    %154 = vmatpush1.bf16.xpose.msra.mxu0 0
    %155 = vmatprep.subr.bf16.mxu0 0
    %156 = vmatpush1.bf16.xpose.msra.mxu0 0
    %157 = vmatprep.subr.bf16.mxu0 0
    %158 = vmatpush1.bf16.xpose.msra.mxu0 0
    %159 = vmatprep.subr.bf16.mxu0 0
    %160 = vmatpush1.bf16.xpose.msra.mxu0 0
    %161 = vmatprep.subr.bf16.mxu0 0
    %162 = vmatpush1.bf16.xpose.msra.mxu0 0
    %163 = vmatprep.subr.bf16.mxu0 0
    %164 = vmatpush1.bf16.xpose.msra.mxu0 0
    %165 = vmatprep.subr.bf16.mxu0 0
    %166 = vmatpush1.bf16.xpose.msra.mxu0 0
    %167 = vmatprep.subr.bf16.mxu0 0
    %168 = vmatpush1.bf16.xpose.msra.mxu0 0
    %169 = vmatprep.subr.bf16.mxu0 0
    %170 = vmatpush1.bf16.xpose.msra.mxu0 0
    %171 = vmatprep.subr.bf16.mxu0 0
    %172 = vmatpush1.bf16.xpose.msra.mxu0 0
    %173 = vmatprep.subr.bf16.mxu0 0
    %174 = vmatpush1.bf16.xpose.msra.mxu0 0
    %175 = vmatprep.mubr.bf16.mxu0 0
    %176 = vmatmul.mubr.bf16.gmra.mrb[0].mxu0 %v138
    %v177 = vpop.f32.mrb[0].mxu0
    %v178 = vadd.f32 0.0, %v177
    %v179 = vpop.f32.mrb[0].mxu0
    %v180 = vpop.f32.mrb[0].mxu0
    %v181 = vpop.f32.mrb[0].mxu0
    %182 = vdwg.mxu0
    %183 = vrot.lane.b32.xlu0 %v133, 96
    %v184 = vpop.permute.xlu0 %183
    %v186 = vsel %vm136, %v133, 0
    %v189 = vsel %vm136, %v184, 0
    %191 = vmatprep.subr.bf16.mxu0 0
    %192 = vmatpush1.bf16.xpose.msra.mxu0 %v189
    %193 = vmatprep.subr.bf16.mxu0 0
    %194 = vmatpush1.bf16.xpose.msra.mxu0 0
    %195 = vmatprep.subr.bf16.mxu0 0
    %196 = vmatpush1.bf16.xpose.msra.mxu0 0
    %197 = vmatprep.subr.bf16.mxu0 0
    %198 = vmatpush1.bf16.xpose.msra.mxu0 0
    %199 = vmatprep.subr.bf16.mxu0 0
    %200 = vmatpush1.bf16.xpose.msra.mxu0 0
    %201 = vmatprep.subr.bf16.mxu0 0
    %202 = vmatpush1.bf16.xpose.msra.mxu0 0
    %203 = vmatprep.subr.bf16.mxu0 0
    %204 = vmatpush1.bf16.xpose.msra.mxu0 0
    %205 = vmatprep.subr.bf16.mxu0 0
    %206 = vmatpush1.bf16.xpose.msra.mxu0 0
    %207 = vmatprep.subr.bf16.mxu0 0
    %208 = vmatpush1.bf16.xpose.msra.mxu0 0
    %209 = vmatprep.subr.bf16.mxu0 0
    %210 = vmatpush1.bf16.xpose.msra.mxu0 0
    %211 = vmatprep.subr.bf16.mxu0 0
    %212 = vmatpush1.bf16.xpose.msra.mxu0 0
    %213 = vmatprep.subr.bf16.mxu0 0
    %214 = vmatpush1.bf16.xpose.msra.mxu0 0
    %215 = vmatprep.subr.bf16.mxu0 0
    %216 = vmatpush1.bf16.xpose.msra.mxu0 0
    %217 = vmatprep.subr.bf16.mxu0 0
    %218 = vmatpush1.bf16.xpose.msra.mxu0 0
    %219 = vmatprep.subr.bf16.mxu0 0
    %220 = vmatpush1.bf16.xpose.msra.mxu0 0
    %221 = vmatprep.subr.bf16.mxu0 0
    %222 = vmatpush1.bf16.xpose.msra.mxu0 0
    %223 = vmatprep.mubr.bf16.mxu0 0
    %224 = vmatmul.mubr.bf16.gmra.mrb[0].mxu0 %v186
    %v225 = vpop.f32.mrb[0].mxu0
    %v226 = vadd.f32 0.0, %v225
    %v227 = vpop.f32.mrb[0].mxu0
    %v228 = vpop.f32.mrb[0].mxu0
    %v229 = vpop.f32.mrb[0].mxu0
    %230 = vdwg.mxu0
    %v231 = vsel %vm136, %v178, -inf
    %232 = vmax.xlane.f32.xlu0 %v231
    %v233 = vpop.xlane.xlu0 %232
    %v234 = vsel %vm136, %v226, -inf
    %235 = vmax.xlane.f32.xlu0 %v234
    %v236 = vpop.xlane.xlu0 %235
    %v237 = vsub.f32 %v178, %v233
    %v238 = vsub.f32 %v226, %v236
    %v239 = vmul.f32 %v237, 1.442695
    %v240 = vpow.pop %v239
    %v241 = vmul.f32 %v238, 1.442695
    %v242 = vpow.pop %v241
    %v243 = vsel %vm136, %v240, 0.0
    %244 = vadd.xlane.f32.xlu0 %v243
    %v245 = vpop.xlane.xlu0 %244
    %v246 = vsel %vm136, %v242, 0.0
    %247 = vadd.xlane.f32.xlu0 %v246
    %v248 = vpop.xlane.xlu0 %247
    %v249 = vrcp.pop %v245
    %v250 = vrcp.pop %v248
    %v251 = vmul.f32 %v240, %v249
    %v252 = vmul.f32 %v242, %v250
    %v253 = vpack.c.bf16 %v251, %v251
    %v254 = vpack.c.bf16 %v252, %v252
    %255 = vrot.lane.b32.xlu0 %v132, 64
    %v256 = vpop.permute.xlu0 %255
    %v258 = vsel %vm136, %v253, 0
    %vm260 = vcmask 1043456
    %v262 = vsel %vm260, %v256, 0
    %264 = vmatprep.subr.bf16.mxu0 0
    %265 = vmatpush1.bf16.msra.mxu0 %v262
    %266 = vmatprep.subr.bf16.mxu0 0
    %267 = vmatpush1.bf16.msra.mxu0 0
    %268 = vmatprep.subr.bf16.mxu0 0
    %269 = vmatpush1.bf16.msra.mxu0 0
    %270 = vmatprep.subr.bf16.mxu0 0
    %271 = vmatpush1.bf16.msra.mxu0 0
    %272 = vmatprep.subr.bf16.mxu0 0
    %273 = vmatpush1.bf16.msra.mxu0 0
    %274 = vmatprep.subr.bf16.mxu0 0
    %275 = vmatpush1.bf16.msra.mxu0 0
    %276 = vmatprep.subr.bf16.mxu0 0
    %277 = vmatpush1.bf16.msra.mxu0 0
    %278 = vmatprep.subr.bf16.mxu0 0
    %279 = vmatpush1.bf16.msra.mxu0 0
    %280 = vmatprep.subr.bf16.mxu0 0
    %281 = vmatpush1.bf16.msra.mxu0 0
    %282 = vmatprep.subr.bf16.mxu0 0
    %283 = vmatpush1.bf16.msra.mxu0 0
    %284 = vmatprep.subr.bf16.mxu0 0
    %285 = vmatpush1.bf16.msra.mxu0 0
    %286 = vmatprep.subr.bf16.mxu0 0
    %287 = vmatpush1.bf16.msra.mxu0 0
    %288 = vmatprep.subr.bf16.mxu0 0
    %289 = vmatpush1.bf16.msra.mxu0 0
    %290 = vmatprep.subr.bf16.mxu0 0
    %291 = vmatpush1.bf16.msra.mxu0 0
    %292 = vmatprep.subr.bf16.mxu0 0
    %293 = vmatpush1.bf16.msra.mxu0 0
    %294 = vmatprep.subr.bf16.mxu0 0
    %295 = vmatpush1.bf16.msra.mxu0 0
    %296 = vmatprep.mubr.bf16.mxu0 0
    %297 = vmatmul.mubr.bf16.gmra.mrb[0].mxu0 %v258
    %v298 = vpop.f32.mrb[0].mxu0
    %v299 = vadd.f32 0.0, %v298
    %v300 = vpop.f32.mrb[0].mxu0
    %v301 = vpop.f32.mrb[0].mxu0
    %v302 = vpop.f32.mrb[0].mxu0
    %303 = vdwg.mxu0
    %304 = vrot.lane.b32.xlu0 %v133, 64
    %v305 = vpop.permute.xlu0 %304
    %v307 = vsel %vm136, %v254, 0
    %v310 = vsel %vm260, %v305, 0
    %312 = vmatprep.subr.bf16.mxu0 0
    %313 = vmatpush1.bf16.msra.mxu0 %v310
    %314 = vmatprep.subr.bf16.mxu0 0
    %315 = vmatpush1.bf16.msra.mxu0 0
    %316 = vmatprep.subr.bf16.mxu0 0
    %317 = vmatpush1.bf16.msra.mxu0 0
    %318 = vmatprep.subr.bf16.mxu0 0
    %319 = vmatpush1.bf16.msra.mxu0 0
    %320 = vmatprep.subr.bf16.mxu0 0
    %321 = vmatpush1.bf16.msra.mxu0 0
    %322 = vmatprep.subr.bf16.mxu0 0
    %323 = vmatpush1.bf16.msra.mxu0 0
    %324 = vmatprep.subr.bf16.mxu0 0
    %325 = vmatpush1.bf16.msra.mxu0 0
    %326 = vmatprep.subr.bf16.mxu0 0
    %327 = vmatpush1.bf16.msra.mxu0 0
    %328 = vmatprep.subr.bf16.mxu0 0
    %329 = vmatpush1.bf16.msra.mxu0 0
    %330 = vmatprep.subr.bf16.mxu0 0
    %331 = vmatpush1.bf16.msra.mxu0 0
    %332 = vmatprep.subr.bf16.mxu0 0
    %333 = vmatpush1.bf16.msra.mxu0 0
    %334 = vmatprep.subr.bf16.mxu0 0
    %335 = vmatpush1.bf16.msra.mxu0 0
    %336 = vmatprep.subr.bf16.mxu0 0
    %337 = vmatpush1.bf16.msra.mxu0 0
    %338 = vmatprep.subr.bf16.mxu0 0
    %339 = vmatpush1.bf16.msra.mxu0 0
    %340 = vmatprep.subr.bf16.mxu0 0
    %341 = vmatpush1.bf16.msra.mxu0 0
    %342 = vmatprep.subr.bf16.mxu0 0
    %343 = vmatpush1.bf16.msra.mxu0 0
    %344 = vmatprep.mubr.bf16.mxu0 0
    %345 = vmatmul.mubr.bf16.gmra.mrb[0].mxu0 %v307
    %v346 = vpop.f32.mrb[0].mxu0
    %v347 = vadd.f32 0.0, %v346
    %v348 = vpop.f32.mrb[0].mxu0
    %v349 = vpop.f32.mrb[0].mxu0
    %v350 = vpop.f32.mrb[0].mxu0
    %351 = vdwg.mxu0
    %v352 = vpack.c.bf16 %v347, %v299
    %353 = vst.msk [vmem:[#allocation2] sm:$0xff] %vm136, %v352
    %354 = vrot.lane.b32.xlu0 %v132, 120
    %v355 = vpop.permute.xlu0 %354
    %356 = vrot.lane.b32.xlu0 %v132, 88
    %v357 = vpop.permute.xlu0 %356
    %v359 = vsel %vm136, %v355, 0
    %v362 = vsel %vm136, %v357, 0
    %364 = vmatprep.subr.bf16.mxu0 0
    %365 = vmatpush1.bf16.xpose.msra.mxu0 %v362
    %366 = vmatprep.subr.bf16.mxu0 0
    %367 = vmatpush1.bf16.xpose.msra.mxu0 0
    %368 = vmatprep.subr.bf16.mxu0 0
    %369 = vmatpush1.bf16.xpose.msra.mxu0 0
    %370 = vmatprep.subr.bf16.mxu0 0
    %371 = vmatpush1.bf16.xpose.msra.mxu0 0
    %372 = vmatprep.subr.bf16.mxu0 0
    %373 = vmatpush1.bf16.xpose.msra.mxu0 0
    %374 = vmatprep.subr.bf16.mxu0 0
    %375 = vmatpush1.bf16.xpose.msra.mxu0 0
    %376 = vmatprep.subr.bf16.mxu0 0
    %377 = vmatpush1.bf16.xpose.msra.mxu0 0
    %378 = vmatprep.subr.bf16.mxu0 0
    %379 = vmatpush1.bf16.xpose.msra.mxu0 0
    %380 = vmatprep.subr.bf16.mxu0 0
    %381 = vmatpush1.bf16.xpose.msra.mxu0 0
    %382 = vmatprep.subr.bf16.mxu0 0
    %383 = vmatpush1.bf16.xpose.msra.mxu0 0
    %384 = vmatprep.subr.bf16.mxu0 0
    %385 = vmatpush1.bf16.xpose.msra.mxu0 0
    %386 = vmatprep.subr.bf16.mxu0 0
    %387 = vmatpush1.bf16.xpose.msra.mxu0 0
    %388 = vmatprep.subr.bf16.mxu0 0
    %389 = vmatpush1.bf16.xpose.msra.mxu0 0
    %390 = vmatprep.subr.bf16.mxu0 0
    %391 = vmatpush1.bf16.xpose.msra.mxu0 0
    %392 = vmatprep.subr.bf16.mxu0 0
    %393 = vmatpush1.bf16.xpose.msra.mxu0 0
    %394 = vmatprep.subr.bf16.mxu0 0
    %395 = vmatpush1.bf16.xpose.msra.mxu0 0
    %396 = vmatprep.mubr.bf16.mxu0 0
    %397 = vmatmul.mubr.bf16.gmra.mrb[0].mxu0 %v359
    %v398 = vpop.f32.mrb[0].mxu0
    %v399 = vadd.f32 0.0, %v398
    %v400 = vpop.f32.mrb[0].mxu0
    %v401 = vpop.f32.mrb[0].mxu0
    %v402 = vpop.f32.mrb[0].mxu0
    %403 = vdwg.mxu0
    %404 = vrot.lane.b32.xlu0 %v133, 120
    %v405 = vpop.permute.xlu0 %404
    %406 = vrot.lane.b32.xlu0 %v133, 88
    %v407 = vpop.permute.xlu0 %406
    %v409 = vsel %vm136, %v405, 0
    %v412 = vsel %vm136, %v407, 0
    %414 = vmatprep.subr.bf16.mxu0 0
    %415 = vmatpush1.bf16.xpose.msra.mxu0 %v412
    %416 = vmatprep.subr.bf16.mxu0 0
    %417 = vmatpush1.bf16.xpose.msra.mxu0 0
    %418 = vmatprep.subr.bf16.mxu0 0
    %419 = vmatpush1.bf16.xpose.msra.mxu0 0
    %420 = vmatprep.subr.bf16.mxu0 0
    %421 = vmatpush1.bf16.xpose.msra.mxu0 0
    %422 = vmatprep.subr.bf16.mxu0 0
    %423 = vmatpush1.bf16.xpose.msra.mxu0 0
    %424 = vmatprep.subr.bf16.mxu0 0
    %425 = vmatpush1.bf16.xpose.msra.mxu0 0
    %426 = vmatprep.subr.bf16.mxu0 0
    %427 = vmatpush1.bf16.xpose.msra.mxu0 0
    %428 = vmatprep.subr.bf16.mxu0 0
    %429 = vmatpush1.bf16.xpose.msra.mxu0 0
    %430 = vmatprep.subr.bf16.mxu0 0
    %431 = vmatpush1.bf16.xpose.msra.mxu0 0
    %432 = vmatprep.subr.bf16.mxu0 0
    %433 = vmatpush1.bf16.xpose.msra.mxu0 0
    %434 = vmatprep.subr.bf16.mxu0 0
    %435 = vmatpush1.bf16.xpose.msra.mxu0 0
    %436 = vmatprep.subr.bf16.mxu0 0
    %437 = vmatpush1.bf16.xpose.msra.mxu0 0
    %438 = vmatprep.subr.bf16.mxu0 0
    %439 = vmatpush1.bf16.xpose.msra.mxu0 0
    %440 = vmatprep.subr.bf16.mxu0 0
    %441 = vmatpush1.bf16.xpose.msra.mxu0 0
    %442 = vmatprep.subr.bf16.mxu0 0
    %443 = vmatpush1.bf16.xpose.msra.mxu0 0
    %444 = vmatprep.subr.bf16.mxu0 0
    %445 = vmatpush1.bf16.xpose.msra.mxu0 0
    %446 = vmatprep.mubr.bf16.mxu0 0
    %447 = vmatmul.mubr.bf16.gmra.mrb[0].mxu0 %v409
    %v448 = vpop.f32.mrb[0].mxu0
    %v449 = vadd.f32 0.0, %v448
    %v450 = vpop.f32.mrb[0].mxu0
    %v451 = vpop.f32.mrb[0].mxu0
    %v452 = vpop.f32.mrb[0].mxu0
    %453 = vdwg.mxu0
    %v454 = vsel %vm136, %v399, -inf
    %455 = vmax.xlane.f32.xlu0 %v454
    %v456 = vpop.xlane.xlu0 %455
    %v457 = vsel %vm136, %v449, -inf
    %458 = vmax.xlane.f32.xlu0 %v457
    %v459 = vpop.xlane.xlu0 %458
    %v460 = vsub.f32 %v399, %v456
    %v461 = vsub.f32 %v449, %v459
    %v462 = vmul.f32 %v460, 1.442695
    %v463 = vpow.pop %v462
    %v464 = vmul.f32 %v461, 1.442695
    %v465 = vpow.pop %v464
    %v466 = vsel %vm136, %v463, 0.0
    %467 = vadd.xlane.f32.xlu0 %v466
    %v468 = vpop.xlane.xlu0 %467
    %v469 = vsel %vm136, %v465, 0.0
    %470 = vadd.xlane.f32.xlu0 %v469
    %v471 = vpop.xlane.xlu0 %470
    %v472 = vrcp.pop %v468
    %v473 = vrcp.pop %v471
    %v474 = vmul.f32 %v463, %v472
    %v475 = vmul.f32 %v465, %v473
    %v476 = vpack.c.bf16 %v474, %v474
    %v477 = vpack.c.bf16 %v475, %v475
    %478 = vrot.lane.b32.xlu0 %v132, 56
    %v479 = vpop.permute.xlu0 %478
    %v481 = vsel %vm136, %v476, 0
    %v484 = vsel %vm260, %v479, 0
    %486 = vmatprep.subr.bf16.mxu0 0
    %487 = vmatpush1.bf16.msra.mxu0 %v484
    %488 = vmatprep.subr.bf16.mxu0 0
    %489 = vmatpush1.bf16.msra.mxu0 0
    %490 = vmatprep.subr.bf16.mxu0 0
    %491 = vmatpush1.bf16.msra.mxu0 0
    %492 = vmatprep.subr.bf16.mxu0 0
    %493 = vmatpush1.bf16.msra.mxu0 0
    %494 = vmatprep.subr.bf16.mxu0 0
    %495 = vmatpush1.bf16.msra.mxu0 0
    %496 = vmatprep.subr.bf16.mxu0 0
    %497 = vmatpush1.bf16.msra.mxu0 0
    %498 = vmatprep.subr.bf16.mxu0 0
    %499 = vmatpush1.bf16.msra.mxu0 0
    %500 = vmatprep.subr.bf16.mxu0 0
    %501 = vmatpush1.bf16.msra.mxu0 0
    %502 = vmatprep.subr.bf16.mxu0 0
    %503 = vmatpush1.bf16.msra.mxu0 0
    %504 = vmatprep.subr.bf16.mxu0 0
    %505 = vmatpush1.bf16.msra.mxu0 0
    %506 = vmatprep.subr.bf16.mxu0 0
    %507 = vmatpush1.bf16.msra.mxu0 0
    %508 = vmatprep.subr.bf16.mxu0 0
    %509 = vmatpush1.bf16.msra.mxu0 0
    %510 = vmatprep.subr.bf16.mxu0 0
    %511 = vmatpush1.bf16.msra.mxu0 0
    %512 = vmatprep.subr.bf16.mxu0 0
    %513 = vmatpush1.bf16.msra.mxu0 0
    %514 = vmatprep.subr.bf16.mxu0 0
    %515 = vmatpush1.bf16.msra.mxu0 0
    %516 = vmatprep.subr.bf16.mxu0 0
    %517 = vmatpush1.bf16.msra.mxu0 0
    %518 = vmatprep.mubr.bf16.mxu0 0
    %519 = vmatmul.mubr.bf16.gmra.mrb[0].mxu0 %v481
    %v520 = vpop.f32.mrb[0].mxu0
    %v521 = vadd.f32 0.0, %v520
    %v522 = vpop.f32.mrb[0].mxu0
    %v523 = vpop.f32.mrb[0].mxu0
    %v524 = vpop.f32.mrb[0].mxu0
    %525 = vdwg.mxu0
    %526 = vrot.lane.b32.xlu0 %v133, 56
    %v527 = vpop.permute.xlu0 %526
    %v529 = vsel %vm136, %v477, 0
    %v532 = vsel %vm260, %v527, 0
    %534 = vmatprep.subr.bf16.mxu0 0
    %535 = vmatpush1.bf16.msra.mxu0 %v532
    %536 = vmatprep.subr.bf16.mxu0 0
    %537 = vmatpush1.bf16.msra.mxu0 0
    %538 = vmatprep.subr.bf16.mxu0 0
    %539 = vmatpush1.bf16.msra.mxu0 0
    %540 = vmatprep.subr.bf16.mxu0 0
    %541 = vmatpush1.bf16.msra.mxu0 0
    %542 = vmatprep.subr.bf16.mxu0 0
    %543 = vmatpush1.bf16.msra.mxu0 0
    %544 = vmatprep.subr.bf16.mxu0 0
    %545 = vmatpush1.bf16.msra.mxu0 0
    %546 = vmatprep.subr.bf16.mxu0 0
    %547 = vmatpush1.bf16.msra.mxu0 0
    %548 = vmatprep.subr.bf16.mxu0 0
    %549 = vmatpush1.bf16.msra.mxu0 0
    %550 = vmatprep.subr.bf16.mxu0 0
    %551 = vmatpush1.bf16.msra.mxu0 0
    %552 = vmatprep.subr.bf16.mxu0 0
    %553 = vmatpush1.bf16.msra.mxu0 0
    %554 = vmatprep.subr.bf16.mxu0 0
    %555 = vmatpush1.bf16.msra.mxu0 0
    %556 = vmatprep.subr.bf16.mxu0 0
    %557 = vmatpush1.bf16.msra.mxu0 0
    %558 = vmatprep.subr.bf16.mxu0 0
    %559 = vmatpush1.bf16.msra.mxu0 0
    %560 = vmatprep.subr.bf16.mxu0 0
    %561 = vmatpush1.bf16.msra.mxu0 0
    %562 = vmatprep.subr.bf16.mxu0 0
    %563 = vmatpush1.bf16.msra.mxu0 0
    %564 = vmatprep.subr.bf16.mxu0 0
    %565 = vmatpush1.bf16.msra.mxu0 0
    %566 = vmatprep.mubr.bf16.mxu0 0
    %567 = vmatmul.mubr.bf16.gmra.mrb[0].mxu0 %v529
    %v568 = vpop.f32.mrb[0].mxu0
    %v569 = vadd.f32 0.0, %v568
    %v570 = vpop.f32.mrb[0].mxu0
    %v571 = vpop.f32.mrb[0].mxu0
    %v572 = vpop.f32.mrb[0].mxu0
    %573 = vdwg.mxu0
    %v574 = vpack.c.bf16 %v569, %v521
    %576 = vrot.lane.b32.xlu0 %v574, 8
    %v577 = vpop.permute.xlu0 %576
    %vm579 = vcmask 130112
    %580 = vst.msk [vmem:[#allocation2] sm:$0xff] %vm579, %v577
    %581 = vrot.lane.b32.xlu0 %v132, 112
    %v582 = vpop.permute.xlu0 %581
    %583 = vrot.lane.b32.xlu0 %v132, 80
    %v584 = vpop.permute.xlu0 %583
    %v586 = vsel %vm136, %v582, 0
    %v589 = vsel %vm136, %v584, 0
    %591 = vmatprep.subr.bf16.mxu0 0
    %592 = vmatpush1.bf16.xpose.msra.mxu0 %v589
    %593 = vmatprep.subr.bf16.mxu0 0
    %594 = vmatpush1.bf16.xpose.msra.mxu0 0
    %595 = vmatprep.subr.bf16.mxu0 0
    %596 = vmatpush1.bf16.xpose.msra.mxu0 0
    %597 = vmatprep.subr.bf16.mxu0 0
    %598 = vmatpush1.bf16.xpose.msra.mxu0 0
    %599 = vmatprep.subr.bf16.mxu0 0
    %600 = vmatpush1.bf16.xpose.msra.mxu0 0
    %601 = vmatprep.subr.bf16.mxu0 0
    %602 = vmatpush1.bf16.xpose.msra.mxu0 0
    %603 = vmatprep.subr.bf16.mxu0 0
    %604 = vmatpush1.bf16.xpose.msra.mxu0 0
    %605 = vmatprep.subr.bf16.mxu0 0
    %606 = vmatpush1.bf16.xpose.msra.mxu0 0
    %607 = vmatprep.subr.bf16.mxu0 0
    %608 = vmatpush1.bf16.xpose.msra.mxu0 0
    %609 = vmatprep.subr.bf16.mxu0 0
    %610 = vmatpush1.bf16.xpose.msra.mxu0 0
    %611 = vmatprep.subr.bf16.mxu0 0
    %612 = vmatpush1.bf16.xpose.msra.mxu0 0
    %613 = vmatprep.subr.bf16.mxu0 0
    %614 = vmatpush1.bf16.xpose.msra.mxu0 0
    %615 = vmatprep.subr.bf16.mxu0 0
    %616 = vmatpush1.bf16.xpose.msra.mxu0 0
    %617 = vmatprep.subr.bf16.mxu0 0
    %618 = vmatpush1.bf16.xpose.msra.mxu0 0
    %619 = vmatprep.subr.bf16.mxu0 0
    %620 = vmatpush1.bf16.xpose.msra.mxu0 0
    %621 = vmatprep.subr.bf16.mxu0 0
    %622 = vmatpush1.bf16.xpose.msra.mxu0 0
    %623 = vmatprep.mubr.bf16.mxu0 0
    %624 = vmatmul.mubr.bf16.gmra.mrb[0].mxu0 %v586
    %v625 = vpop.f32.mrb[0].mxu0
    %v626 = vadd.f32 0.0, %v625
    %v627 = vpop.f32.mrb[0].mxu0
    %v628 = vpop.f32.mrb[0].mxu0
    %v629 = vpop.f32.mrb[0].mxu0
    %630 = vdwg.mxu0
    %631 = vrot.lane.b32.xlu0 %v133, 112
    %v632 = vpop.permute.xlu0 %631
    %633 = vrot.lane.b32.xlu0 %v133, 80
    %v634 = vpop.permute.xlu0 %633
    %v636 = vsel %vm136, %v632, 0
    %v639 = vsel %vm136, %v634, 0
    %641 = vmatprep.subr.bf16.mxu0 0
    %642 = vmatpush1.bf16.xpose.msra.mxu0 %v639
    %643 = vmatprep.subr.bf16.mxu0 0
    %644 = vmatpush1.bf16.xpose.msra.mxu0 0
    %645 = vmatprep.subr.bf16.mxu0 0
    %646 = vmatpush1.bf16.xpose.msra.mxu0 0
    %647 = vmatprep.subr.bf16.mxu0 0
    %648 = vmatpush1.bf16.xpose.msra.mxu0 0
    %649 = vmatprep.subr.bf16.mxu0 0
    %650 = vmatpush1.bf16.xpose.msra.mxu0 0
    %651 = vmatprep.subr.bf16.mxu0 0
    %652 = vmatpush1.bf16.xpose.msra.mxu0 0
    %653 = vmatprep.subr.bf16.mxu0 0
    %654 = vmatpush1.bf16.xpose.msra.mxu0 0
    %655 = vmatprep.subr.bf16.mxu0 0
    %656 = vmatpush1.bf16.xpose.msra.mxu0 0
    %657 = vmatprep.subr.bf16.mxu0 0
    %658 = vmatpush1.bf16.xpose.msra.mxu0 0
    %659 = vmatprep.subr.bf16.mxu0 0
    %660 = vmatpush1.bf16.xpose.msra.mxu0 0
    %661 = vmatprep.subr.bf16.mxu0 0
    %662 = vmatpush1.bf16.xpose.msra.mxu0 0
    %663 = vmatprep.subr.bf16.mxu0 0
    %664 = vmatpush1.bf16.xpose.msra.mxu0 0
    %665 = vmatprep.subr.bf16.mxu0 0
    %666 = vmatpush1.bf16.xpose.msra.mxu0 0
    %667 = vmatprep.subr.bf16.mxu0 0
    %668 = vmatpush1.bf16.xpose.msra.mxu0 0
    %669 = vmatprep.subr.bf16.mxu0 0
    %670 = vmatpush1.bf16.xpose.msra.mxu0 0
    %671 = vmatprep.subr.bf16.mxu0 0
    %672 = vmatpush1.bf16.xpose.msra.mxu0 0
    %673 = vmatprep.mubr.bf16.mxu0 0
    %674 = vmatmul.mubr.bf16.gmra.mrb[0].mxu0 %v636
    %v675 = vpop.f32.mrb[0].mxu0
    %v676 = vadd.f32 0.0, %v675
    %v677 = vpop.f32.mrb[0].mxu0
    %v678 = vpop.f32.mrb[0].mxu0
    %v679 = vpop.f32.mrb[0].mxu0
    %680 = vdwg.mxu0
    %v681 = vsel %vm136, %v626, -inf
    %682 = vmax.xlane.f32.xlu0 %v681
    %v683 = vpop.xlane.xlu0 %682
    %v684 = vsel %vm136, %v676, -inf
    %685 = vmax.xlane.f32.xlu0 %v684
    %v686 = vpop.xlane.xlu0 %685
    %v687 = vsub.f32 %v626, %v683
    %v688 = vsub.f32 %v676, %v686
    %v689 = vmul.f32 %v687, 1.442695
    %v690 = vpow.pop %v689
    %v691 = vmul.f32 %v688, 1.442695
    %v692 = vpow.pop %v691
    %v693 = vsel %vm136, %v690, 0.0
    %694 = vadd.xlane.f32.xlu0 %v693
    %v695 = vpop.xlane.xlu0 %694
    %v696 = vsel %vm136, %v692, 0.0
    %697 = vadd.xlane.f32.xlu0 %v696
    %v698 = vpop.xlane.xlu0 %697
    %v699 = vrcp.pop %v695
    %v700 = vrcp.pop %v698
    %v701 = vmul.f32 %v690, %v699
    %v702 = vmul.f32 %v692, %v700
    %v703 = vpack.c.bf16 %v701, %v701
    %v704 = vpack.c.bf16 %v702, %v702
    %705 = vrot.lane.b32.xlu0 %v132, 48
    %v706 = vpop.permute.xlu0 %705
    %v708 = vsel %vm136, %v703, 0
    %v711 = vsel %vm260, %v706, 0
    %713 = vmatprep.subr.bf16.mxu0 0
    %714 = vmatpush1.bf16.msra.mxu0 %v711
    %715 = vmatprep.subr.bf16.mxu0 0
    %716 = vmatpush1.bf16.msra.mxu0 0
    %717 = vmatprep.subr.bf16.mxu0 0
    %718 = vmatpush1.bf16.msra.mxu0 0
    %719 = vmatprep.subr.bf16.mxu0 0
    %720 = vmatpush1.bf16.msra.mxu0 0
    %721 = vmatprep.subr.bf16.mxu0 0
    %722 = vmatpush1.bf16.msra.mxu0 0
    %723 = vmatprep.subr.bf16.mxu0 0
    %724 = vmatpush1.bf16.msra.mxu0 0
    %725 = vmatprep.subr.bf16.mxu0 0
    %726 = vmatpush1.bf16.msra.mxu0 0
    %727 = vmatprep.subr.bf16.mxu0 0
    %728 = vmatpush1.bf16.msra.mxu0 0
    %729 = vmatprep.subr.bf16.mxu0 0
    %730 = vmatpush1.bf16.msra.mxu0 0
    %731 = vmatprep.subr.bf16.mxu0 0
    %732 = vmatpush1.bf16.msra.mxu0 0
    %733 = vmatprep.subr.bf16.mxu0 0
    %734 = vmatpush1.bf16.msra.mxu0 0
    %735 = vmatprep.subr.bf16.mxu0 0
    %736 = vmatpush1.bf16.msra.mxu0 0
    %737 = vmatprep.subr.bf16.mxu0 0
    %738 = vmatpush1.bf16.msra.mxu0 0
    %739 = vmatprep.subr.bf16.mxu0 0
    %740 = vmatpush1.bf16.msra.mxu0 0
    %741 = vmatprep.subr.bf16.mxu0 0
    %742 = vmatpush1.bf16.msra.mxu0 0
    %743 = vmatprep.subr.bf16.mxu0 0
    %744 = vmatpush1.bf16.msra.mxu0 0
    %745 = vmatprep.mubr.bf16.mxu0 0
    %746 = vmatmul.mubr.bf16.gmra.mrb[0].mxu0 %v708
    %v747 = vpop.f32.mrb[0].mxu0
    %v748 = vadd.f32 0.0, %v747
    %v749 = vpop.f32.mrb[0].mxu0
    %v750 = vpop.f32.mrb[0].mxu0
    %v751 = vpop.f32.mrb[0].mxu0
    %752 = vdwg.mxu0
    %753 = vrot.lane.b32.xlu0 %v133, 48
    %v754 = vpop.permute.xlu0 %753
    %v756 = vsel %vm136, %v704, 0
    %v759 = vsel %vm260, %v754, 0
    %761 = vmatprep.subr.bf16.mxu0 0
    %762 = vmatpush1.bf16.msra.mxu0 %v759
    %763 = vmatprep.subr.bf16.mxu0 0
    %764 = vmatpush1.bf16.msra.mxu0 0
    %765 = vmatprep.subr.bf16.mxu0 0
    %766 = vmatpush1.bf16.msra.mxu0 0
    %767 = vmatprep.subr.bf16.mxu0 0
    %768 = vmatpush1.bf16.msra.mxu0 0
    %769 = vmatprep.subr.bf16.mxu0 0
    %770 = vmatpush1.bf16.msra.mxu0 0
    %771 = vmatprep.subr.bf16.mxu0 0
    %772 = vmatpush1.bf16.msra.mxu0 0
    %773 = vmatprep.subr.bf16.mxu0 0
    %774 = vmatpush1.bf16.msra.mxu0 0
    %775 = vmatprep.subr.bf16.mxu0 0
    %776 = vmatpush1.bf16.msra.mxu0 0
    %777 = vmatprep.subr.bf16.mxu0 0
    %778 = vmatpush1.bf16.msra.mxu0 0
    %779 = vmatprep.subr.bf16.mxu0 0
    %780 = vmatpush1.bf16.msra.mxu0 0
    %781 = vmatprep.subr.bf16.mxu0 0
    %782 = vmatpush1.bf16.msra.mxu0 0
    %783 = vmatprep.subr.bf16.mxu0 0
    %784 = vmatpush1.bf16.msra.mxu0 0
    %785 = vmatprep.subr.bf16.mxu0 0
    %786 = vmatpush1.bf16.msra.mxu0 0
    %787 = vmatprep.subr.bf16.mxu0 0
    %788 = vmatpush1.bf16.msra.mxu0 0
    %789 = vmatprep.subr.bf16.mxu0 0
    %790 = vmatpush1.bf16.msra.mxu0 0
    %791 = vmatprep.subr.bf16.mxu0 0
    %792 = vmatpush1.bf16.msra.mxu0 0
    %793 = vmatprep.mubr.bf16.mxu0 0
    %794 = vmatmul.mubr.bf16.gmra.mrb[0].mxu0 %v756
    %v795 = vpop.f32.mrb[0].mxu0
    %v796 = vadd.f32 0.0, %v795
    %v797 = vpop.f32.mrb[0].mxu0
    %v798 = vpop.f32.mrb[0].mxu0
    %v799 = vpop.f32.mrb[0].mxu0
    %800 = vdwg.mxu0
    %v801 = vpack.c.bf16 %v796, %v748
    %803 = vrot.lane.b32.xlu0 %v801, 16
    %v804 = vpop.permute.xlu0 %803
    %vm806 = vcmask 195712
    %807 = vst.msk [vmem:[#allocation2] sm:$0xff] %vm806, %v804
    %808 = vrot.lane.b32.xlu0 %v132, 104
    %v809 = vpop.permute.xlu0 %808
    %810 = vrot.lane.b32.xlu0 %v132, 72
    %v811 = vpop.permute.xlu0 %810
    %v813 = vsel %vm136, %v809, 0
    %v816 = vsel %vm136, %v811, 0
    %818 = vmatprep.subr.bf16.mxu0 0
    %819 = vmatpush1.bf16.xpose.msra.mxu0 %v816
    %820 = vmatprep.subr.bf16.mxu0 0
    %821 = vmatpush1.bf16.xpose.msra.mxu0 0
    %822 = vmatprep.subr.bf16.mxu0 0
    %823 = vmatpush1.bf16.xpose.msra.mxu0 0
    %824 = vmatprep.subr.bf16.mxu0 0
    %825 = vmatpush1.bf16.xpose.msra.mxu0 0
    %826 = vmatprep.subr.bf16.mxu0 0
    %827 = vmatpush1.bf16.xpose.msra.mxu0 0
    %828 = vmatprep.subr.bf16.mxu0 0
    %829 = vmatpush1.bf16.xpose.msra.mxu0 0
    %830 = vmatprep.subr.bf16.mxu0 0
    %831 = vmatpush1.bf16.xpose.msra.mxu0 0
    %832 = vmatprep.subr.bf16.mxu0 0
    %833 = vmatpush1.bf16.xpose.msra.mxu0 0
    %834 = vmatprep.subr.bf16.mxu0 0
    %835 = vmatpush1.bf16.xpose.msra.mxu0 0
    %836 = vmatprep.subr.bf16.mxu0 0
    %837 = vmatpush1.bf16.xpose.msra.mxu0 0
    %838 = vmatprep.subr.bf16.mxu0 0
    %839 = vmatpush1.bf16.xpose.msra.mxu0 0
    %840 = vmatprep.subr.bf16.mxu0 0
    %841 = vmatpush1.bf16.xpose.msra.mxu0 0
    %842 = vmatprep.subr.bf16.mxu0 0
    %843 = vmatpush1.bf16.xpose.msra.mxu0 0
    %844 = vmatprep.subr.bf16.mxu0 0
    %845 = vmatpush1.bf16.xpose.msra.mxu0 0
    %846 = vmatprep.subr.bf16.mxu0 0
    %847 = vmatpush1.bf16.xpose.msra.mxu0 0
    %848 = vmatprep.subr.bf16.mxu0 0
    %849 = vmatpush1.bf16.xpose.msra.mxu0 0
    %850 = vmatprep.mubr.bf16.mxu0 0
    %851 = vmatmul.mubr.bf16.gmra.mrb[0].mxu0 %v813
    %v852 = vpop.f32.mrb[0].mxu0
    %v853 = vadd.f32 0.0, %v852
    %v854 = vpop.f32.mrb[0].mxu0
    %v855 = vpop.f32.mrb[0].mxu0
    %v856 = vpop.f32.mrb[0].mxu0
    %857 = vdwg.mxu0
    %858 = vrot.lane.b32.xlu0 %v133, 104
    %v859 = vpop.permute.xlu0 %858
    %860 = vrot.lane.b32.xlu0 %v133, 72
    %v861 = vpop.permute.xlu0 %860
    %v863 = vsel %vm136, %v859, 0
    %v866 = vsel %vm136, %v861, 0
    %868 = vmatprep.subr.bf16.mxu0 0
    %869 = vmatpush1.bf16.xpose.msra.mxu0 %v866
    %870 = vmatprep.subr.bf16.mxu0 0
    %871 = vmatpush1.bf16.xpose.msra.mxu0 0
    %872 = vmatprep.subr.bf16.mxu0 0
    %873 = vmatpush1.bf16.xpose.msra.mxu0 0
    %874 = vmatprep.subr.bf16.mxu0 0
    %875 = vmatpush1.bf16.xpose.msra.mxu0 0
    %876 = vmatprep.subr.bf16.mxu0 0
    %877 = vmatpush1.bf16.xpose.msra.mxu0 0
    %878 = vmatprep.subr.bf16.mxu0 0
    %879 = vmatpush1.bf16.xpose.msra.mxu0 0
    %880 = vmatprep.subr.bf16.mxu0 0
    %881 = vmatpush1.bf16.xpose.msra.mxu0 0
    %882 = vmatprep.subr.bf16.mxu0 0
    %883 = vmatpush1.bf16.xpose.msra.mxu0 0
    %884 = vmatprep.subr.bf16.mxu0 0
    %885 = vmatpush1.bf16.xpose.msra.mxu0 0
    %886 = vmatprep.subr.bf16.mxu0 0
    %887 = vmatpush1.bf16.xpose.msra.mxu0 0
    %888 = vmatprep.subr.bf16.mxu0 0
    %889 = vmatpush1.bf16.xpose.msra.mxu0 0
    %890 = vmatprep.subr.bf16.mxu0 0
    %891 = vmatpush1.bf16.xpose.msra.mxu0 0
    %892 = vmatprep.subr.bf16.mxu0 0
    %893 = vmatpush1.bf16.xpose.msra.mxu0 0
    %894 = vmatprep.subr.bf16.mxu0 0
    %895 = vmatpush1.bf16.xpose.msra.mxu0 0
    %896 = vmatprep.subr.bf16.mxu0 0
    %897 = vmatpush1.bf16.xpose.msra.mxu0 0
    %898 = vmatprep.subr.bf16.mxu0 0
    %899 = vmatpush1.bf16.xpose.msra.mxu0 0
    %900 = vmatprep.mubr.bf16.mxu0 0
    %901 = vmatmul.mubr.bf16.gmra.mrb[0].mxu0 %v863
    %v902 = vpop.f32.mrb[0].mxu0
    %v903 = vadd.f32 0.0, %v902
    %v904 = vpop.f32.mrb[0].mxu0
    %v905 = vpop.f32.mrb[0].mxu0
    %v906 = vpop.f32.mrb[0].mxu0
    %907 = vdwg.mxu0
    %v908 = vsel %vm136, %v853, -inf
    %909 = vmax.xlane.f32.xlu0 %v908
    %v910 = vpop.xlane.xlu0 %909
    %v911 = vsel %vm136, %v903, -inf
    %912 = vmax.xlane.f32.xlu0 %v911
    %v913 = vpop.xlane.xlu0 %912
    %v914 = vsub.f32 %v853, %v910
    %v915 = vsub.f32 %v903, %v913
    %v916 = vmul.f32 %v914, 1.442695
    %v917 = vpow.pop %v916
    %v918 = vmul.f32 %v915, 1.442695
    %v919 = vpow.pop %v918
    %v920 = vsel %vm136, %v917, 0.0
    %921 = vadd.xlane.f32.xlu0 %v920
    %v922 = vpop.xlane.xlu0 %921
    %v923 = vsel %vm136, %v919, 0.0
    %924 = vadd.xlane.f32.xlu0 %v923
    %v925 = vpop.xlane.xlu0 %924
    %v926 = vrcp.pop %v922
    %v927 = vrcp.pop %v925
    %v928 = vmul.f32 %v917, %v926
    %v929 = vmul.f32 %v919, %v927
    %v930 = vpack.c.bf16 %v928, %v928
    %v931 = vpack.c.bf16 %v929, %v929
    %932 = vrot.lane.b32.xlu0 %v132, 40
    %v933 = vpop.permute.xlu0 %932
    %v935 = vsel %vm136, %v930, 0
    %v938 = vsel %vm260, %v933, 0
    %940 = vmatprep.subr.bf16.mxu0 0
    %941 = vmatpush1.bf16.msra.mxu0 %v938
    %942 = vmatprep.subr.bf16.mxu0 0
    %943 = vmatpush1.bf16.msra.mxu0 0
    %944 = vmatprep.subr.bf16.mxu0 0
    %945 = vmatpush1.bf16.msra.mxu0 0
    %946 = vmatprep.subr.bf16.mxu0 0
    %947 = vmatpush1.bf16.msra.mxu0 0
    %948 = vmatprep.subr.bf16.mxu0 0
    %949 = vmatpush1.bf16.msra.mxu0 0
    %950 = vmatprep.subr.bf16.mxu0 0
    %951 = vmatpush1.bf16.msra.mxu0 0
    %952 = vmatprep.subr.bf16.mxu0 0
    %953 = vmatpush1.bf16.msra.mxu0 0
    %954 = vmatprep.subr.bf16.mxu0 0
    %955 = vmatpush1.bf16.msra.mxu0 0
    %956 = vmatprep.subr.bf16.mxu0 0
    %957 = vmatpush1.bf16.msra.mxu0 0
    %958 = vmatprep.subr.bf16.mxu0 0
    %959 = vmatpush1.bf16.msra.mxu0 0
    %960 = vmatprep.subr.bf16.mxu0 0
    %961 = vmatpush1.bf16.msra.mxu0 0
    %962 = vmatprep.subr.bf16.mxu0 0
    %963 = vmatpush1.bf16.msra.mxu0 0
    %964 = vmatprep.subr.bf16.mxu0 0
    %965 = vmatpush1.bf16.msra.mxu0 0
    %966 = vmatprep.subr.bf16.mxu0 0
    %967 = vmatpush1.bf16.msra.mxu0 0
    %968 = vmatprep.subr.bf16.mxu0 0
    %969 = vmatpush1.bf16.msra.mxu0 0
    %970 = vmatprep.subr.bf16.mxu0 0
    %971 = vmatpush1.bf16.msra.mxu0 0
    %972 = vmatprep.mubr.bf16.mxu0 0
    %973 = vmatmul.mubr.bf16.gmra.mrb[0].mxu0 %v935
    %v974 = vpop.f32.mrb[0].mxu0
    %v975 = vadd.f32 0.0, %v974
    %v976 = vpop.f32.mrb[0].mxu0
    %v977 = vpop.f32.mrb[0].mxu0
    %v978 = vpop.f32.mrb[0].mxu0
    %979 = vdwg.mxu0
    %980 = vrot.lane.b32.xlu0 %v133, 40
    %v981 = vpop.permute.xlu0 %980
    %v983 = vsel %vm136, %v931, 0
    %v986 = vsel %vm260, %v981, 0
    %988 = vmatprep.subr.bf16.mxu0 0
    %989 = vmatpush1.bf16.msra.mxu0 %v986
    %990 = vmatprep.subr.bf16.mxu0 0
    %991 = vmatpush1.bf16.msra.mxu0 0
    %992 = vmatprep.subr.bf16.mxu0 0
    %993 = vmatpush1.bf16.msra.mxu0 0
    %994 = vmatprep.subr.bf16.mxu0 0
    %995 = vmatpush1.bf16.msra.mxu0 0
    %996 = vmatprep.subr.bf16.mxu0 0
    %997 = vmatpush1.bf16.msra.mxu0 0
    %998 = vmatprep.subr.bf16.mxu0 0
    %999 = vmatpush1.bf16.msra.mxu0 0
    %1000 = vmatprep.subr.bf16.mxu0 0
    %1001 = vmatpush1.bf16.msra.mxu0 0
    %1002 = vmatprep.subr.bf16.mxu0 0
    %1003 = vmatpush1.bf16.msra.mxu0 0
    %1004 = vmatprep.subr.bf16.mxu0 0
    %1005 = vmatpush1.bf16.msra.mxu0 0
    %1006 = vmatprep.subr.bf16.mxu0 0
    %1007 = vmatpush1.bf16.msra.mxu0 0
    %1008 = vmatprep.subr.bf16.mxu0 0
    %1009 = vmatpush1.bf16.msra.mxu0 0
    %1010 = vmatprep.subr.bf16.mxu0 0
    %1011 = vmatpush1.bf16.msra.mxu0 0
    %1012 = vmatprep.subr.bf16.mxu0 0
    %1013 = vmatpush1.bf16.msra.mxu0 0
    %1014 = vmatprep.subr.bf16.mxu0 0
    %1015 = vmatpush1.bf16.msra.mxu0 0
    %1016 = vmatprep.subr.bf16.mxu0 0
    %1017 = vmatpush1.bf16.msra.mxu0 0
    %1018 = vmatprep.subr.bf16.mxu0 0
    %1019 = vmatpush1.bf16.msra.mxu0 0
    %1020 = vmatprep.mubr.bf16.mxu0 0
    %1021 = vmatmul.mubr.bf16.gmra.mrb[0].mxu0 %v983
    %v1022 = vpop.f32.mrb[0].mxu0
    %v1023 = vadd.f32 0.0, %v1022
    %v1024 = vpop.f32.mrb[0].mxu0
    %v1025 = vpop.f32.mrb[0].mxu0
    %v1026 = vpop.f32.mrb[0].mxu0
    %1027 = vdwg.mxu0
    %v1028 = vpack.c.bf16 %v1023, %v975
    %1030 = vrot.lane.b32.xlu0 %v1028, 24
    %v1031 = vpop.permute.xlu0 %1030
    %vm1033 = vcmask 261312
    %1034 = vst.msk [vmem:[#allocation2] sm:$0xff] %vm1033, %v1031
    %v1035 = vld [vmem:[#allocation2] sm:$0xff]
    %v1036 = vld [vmem:[#allocation8] sm:$0xf]
    %v1037 = vld [vmem:[#allocation8 + $0x4] sm:$0xf]
    %v1038 = vld [vmem:[#allocation8 + $0x8] sm:$0xf]
    %v1039 = vld [vmem:[#allocation8 + $0xc] sm:$0xf]
    %v1040 = vld [vmem:[%s3] sm:$0x1]
    %v1042 = vlaneseq
    %v1043 = vshrl.u32 %v1042, 7
    %v1044 = vsub.s32 0, %v1043
    %v1045 = vrot.slane %v1040, %v1044
    %v1051 = vunpack.c.l.b16 %v1036
    %v1052 = vunpack.c.l.b16 %v1037
    %v1053 = vunpack.c.l.b16 %v1038
    %v1054 = vunpack.c.l.b16 %v1039
    %v1055 = vpack.c.b16 %v1052, %v1051
    %v1056 = vpack.c.b16 %v1054, %v1053
    %v1060 = vsel %vm83, %v1035, 0
    %1062 = vmatprep.subr.bf16.mxu0 0
    %1063 = vmatpush1.bf16.msra.mxu0 %v1055
    %1064 = vmatprep.subr.bf16.mxu0 0
    %1065 = vmatpush1.bf16.msra.mxu0 %v1056
    %1066 = vmatprep.subr.bf16.mxu0 0
    %1067 = vmatpush1.bf16.msra.mxu0 0
    %1068 = vmatprep.subr.bf16.mxu0 0
    %1069 = vmatpush1.bf16.msra.mxu0 0
    %1070 = vmatprep.subr.bf16.mxu0 0
    %1071 = vmatpush1.bf16.msra.mxu0 0
    %1072 = vmatprep.subr.bf16.mxu0 0
    %1073 = vmatpush1.bf16.msra.mxu0 0
    %1074 = vmatprep.subr.bf16.mxu0 0
    %1075 = vmatpush1.bf16.msra.mxu0 0
    %1076 = vmatprep.subr.bf16.mxu0 0
    %1077 = vmatpush1.bf16.msra.mxu0 0
    %1078 = vmatprep.subr.bf16.mxu0 0
    %1079 = vmatpush1.bf16.msra.mxu0 0
    %1080 = vmatprep.subr.bf16.mxu0 0
    %1081 = vmatpush1.bf16.msra.mxu0 0
    %1082 = vmatprep.subr.bf16.mxu0 0
    %1083 = vmatpush1.bf16.msra.mxu0 0
    %1084 = vmatprep.subr.bf16.mxu0 0
    %1085 = vmatpush1.bf16.msra.mxu0 0
    %1086 = vmatprep.subr.bf16.mxu0 0
    %1087 = vmatpush1.bf16.msra.mxu0 0
    %1088 = vmatprep.subr.bf16.mxu0 0
    %1089 = vmatpush1.bf16.msra.mxu0 0
    %1090 = vmatprep.subr.bf16.mxu0 0
    %1091 = vmatpush1.bf16.msra.mxu0 0
    %1092 = vmatprep.subr.bf16.mxu0 0
    %1093 = vmatpush1.bf16.msra.mxu0 0
    %1094 = vmatprep.mubr.bf16.mxu0 0
    %1095 = vmatmul.mubr.bf16.gmra.mrb[0].mxu0 %v1060
    %v1096 = vpop.f32.mrb[0].mxu0
    %v1097 = vadd.f32 %v1045, %v1096
    %v1098 = vpop.f32.mrb[0].mxu0
    %v1099 = vpop.f32.mrb[0].mxu0
    %v1100 = vadd.f32 %v1045, %v1099
    %v1101 = vpop.f32.mrb[0].mxu0
    %1102 = vdwg.mxu0
    %1103 = vst.msk [vmem:[#allocation9] sm:$0xff] %vm83, %v1097
    %1104 = vst.msk [vmem:[#allocation9 + $0x8] sm:$0xff] %vm83, %v1100
    // Predicated region
    $region30: #{tpu_custom_call.1} parent=1 // pred_check
      _
    $region31: #{tpu_custom_call.1} parent=1 // pred_check_branch
      %1106 = sbr.rel (0) target = $region33
    $region32: #{tpu_custom_call.1} parent=1 // pred_region
      %s1108 = ssub.s32 256, 256
      %1109 = vsyncadd [#allocation5], %s1108
      %s1110 = sshll.u32 [#allocation9], 4
      %s1111 = int_to_ptr.vmem [resolvable:$true] %s1110
      %1116 = dma.vmem_to_hbm [thread:$0]  %s1111, 256, %s4, [#allocation5], 128, 128, 8
    $region33: #{tpu_custom_call.1} parent=1 // pred_fallthru
      _
    // Predicated region
    $region34: #{tpu_custom_call.1} parent=1 // pred_check
      _
    $region35: #{tpu_custom_call.1} parent=1 // pred_check_branch
      %1118 = sbr.rel (0) target = $region37
    $region36: #{tpu_custom_call.1} parent=1 // pred_region
      %1119 = dma.done [#allocation5], 256
    $region37: #{tpu_custom_call.1} parent=1 // pred_fallthru
      _
    %1120 = vsyncpa [#allocation4], 1
    %1121 = vsyncpa [#allocation7], 1
    %1122 = vsyncpa [#allocation5], 1

</llo_original>
